<compile_context>
chip_gen: v5e
topology: v5e:2x2
jax: 0.10.0
libtpu: 0.0.40
codegen_flags: <defaults>
</compile_context>

<pallas_src>
import jax
import jax.numpy as jnp
from jax.experimental import pallas as pl
from jax.experimental.pallas import tpu as pltpu


def _round_up(n, m):
    return ((n + m - 1) // m) * m


def _pad_last(a, n):
    pad = n - a.shape[-1]
    if pad == 0:
        return a
    cfg = [(0, 0)] * (a.ndim - 1) + [(0, pad)]
    return jnp.pad(a, cfg)


def _make_kernel(B, T, scale, width, c_in, c_out_pad, use_shortcut, eps=1e-5):
    nums = scale - 1
    BT = B * T
    inv_n = 1.0 / BT

    def bn_fold(y, gamma, beta):
        # nn.BatchNorm1d training-mode statistics, single pass:
        # var = E[y^2] - E[y]^2 (biased), f32, clamped to avoid cancellation.
        s1 = jnp.sum(y, axis=0, keepdims=True)
        s2 = jnp.sum(y * y, axis=0, keepdims=True)
        mean = s1 * inv_n
        var = jnp.maximum(s2 * inv_n - mean * mean, 0.0)
        a = gamma * jax.lax.rsqrt(var + eps)
        b = beta - mean * a
        return a, b

    def kernel(*refs):
        if use_shortcut:
            (x_ref, w1sc_ref, g1_ref, be1_ref, gsc_ref, besc_ref,
             wc_ref, gc_ref, bec_ref, w3_ref, g3_ref, be3_ref,
             sew1_ref, sew2_ref, out_ref) = refs
        else:
            (x_ref, w1_ref, g1_ref, be1_ref,
             wc_ref, gc_ref, bec_ref, w3_ref, g3_ref, be3_ref,
             sew1_ref, sew2_ref, out_ref) = refs

        x = x_ref[...]                                   # (BT, c_in) f32
        x_bf = x.astype(jnp.bfloat16)

        # Per-row "has a valid previous / next timestep" masks.  They reproduce
        # the zero padding of kernel_size=3/padding=1 AND zero the rows where a
        # flat-row neighbour would cross a batch boundary.
        t_idx = jax.lax.broadcasted_iota(jnp.int32, (BT, 1), 0) % T
        mask_prev = (t_idx > 0).astype(jnp.bfloat16)
        mask_next = (t_idx < T - 1).astype(jnp.bfloat16)

        # ---- conv1 (1x1) [+ fused shortcut 1x1 conv]: ONE matmul over x ----
        if use_shortcut:
            y = jnp.dot(x_bf, w1sc_ref[...], preferred_element_type=jnp.float32)
            y1 = y[:, :c_in]                             # conv1 output
            ysc = y[:, c_in:]                            # shortcut conv output
            a_sc, b_sc = bn_fold(ysc, gsc_ref[...], besc_ref[...])
            residual = ysc * a_sc + b_sc                 # (BT, c_out_pad) f32
        else:
            y1 = jnp.dot(x_bf, w1_ref[...], preferred_element_type=jnp.float32)
            # identity shortcut: c_in == c_out, reuse x (lane-pad to c_out_pad)
            if c_out_pad > c_in:
                residual = jnp.concatenate(
                    [x, jnp.zeros((BT, c_out_pad - c_in), jnp.float32)], axis=1)
            else:
                residual = x

        # ---- bn1 + relu (result kept in bf16) ----
        a1, b1 = bn_fold(y1, g1_ref[...], be1_ref[...])
        out1 = jnp.maximum(y1 * a1 + b1, 0.0).astype(jnp.bfloat16)  # (BT, c_in)

        # ---- Res2Net hierarchical k=3 temporal convs ----
        # Each branch's 3-tap conv is ONE matmul: A = [x[t-1] | x[t] | x[t+1]]
        # (bf16, built from static sublane slices) against a (3*width, width)
        # fused weight.
        zrow = jnp.zeros((1, width), jnp.bfloat16)
        chunks = []
        sp = None
        for i in range(nums):
            spx_i = out1[:, i * width:(i + 1) * width]              # (BT, width)
            sp = spx_i if i == 0 else sp + spx_i
            prev = jnp.concatenate([zrow, sp[:BT - 1, :]], axis=0) * mask_prev
            nxt = jnp.concatenate([sp[1:, :], zrow], axis=0) * mask_next
            a3 = jnp.concatenate([prev, sp, nxt], axis=1)           # (BT, 3w) bf16
            conv = jnp.dot(a3, wc_ref[i], preferred_element_type=jnp.float32)
            ai, bi = bn_fold(conv, gc_ref[i], bec_ref[i])
            sp = jnp.maximum(conv * ai + bi, 0.0).astype(jnp.bfloat16)
            chunks.append(sp)
        chunks.append(out1[:, nums * width:scale * width])          # untouched split
        cat = jnp.concatenate(chunks, axis=1)                       # (BT, c_in) bf16

        # ---- conv3 (1x1, single K=c_in matmul) + bn3 ----
        y3 = jnp.dot(cat, w3_ref[...], preferred_element_type=jnp.float32)
        a3c, b3c = bn_fold(y3, g3_ref[...], be3_ref[...])
        out3 = y3 * a3c + b3c                                       # (BT, c_out_pad) f32

        # ---- SE block: mean over time + per-batch channel gate ----
        out3_b = out3.reshape(B, T, c_out_pad)
        pooled = jnp.mean(out3_b, axis=1).astype(jnp.bfloat16)      # (B, c_out_pad)
        h = jnp.maximum(jnp.dot(pooled, sew1_ref[...],
                                preferred_element_type=jnp.float32), 0.0)
        s = jax.nn.sigmoid(jnp.dot(h.astype(jnp.bfloat16), sew2_ref[...],
                                   preferred_element_type=jnp.float32))
        gated = (out3_b * s[:, None, :]).reshape(BT, c_out_pad)

        # ---- residual add + final relu (lane-dense store) ----
        out_ref[...] = jnp.maximum(gated + residual, 0.0)

    return kernel


def init_params(key, c_in, c_out, scale=8, se_ratio=16):
    """Conv biases are intentionally omitted: every conv feeds a training-mode
    BatchNorm, in which a per-channel additive constant cancels exactly."""
    assert c_in % scale == 0
    width = c_in // scale
    nums = scale - 1
    hidden = max(c_out // se_ratio, 1)
    ks = jax.random.split(key, 12)

    def n(k, shape, s=0.1):
        return s * jax.random.normal(k, shape, jnp.float32)

    p = {
        "w1": n(ks[0], (c_in, c_in)),              # conv1 weight stored (cin, cout)
        "g1": 1.0 + n(ks[1], (1, c_in), 0.05),
        "be1": n(ks[2], (1, c_in), 0.05),
        # Fused k=3 conv weights: rows [0:w) = tap x[t-1], [w:2w) = tap x[t],
        # [2w:3w) = tap x[t+1]  (== torch convs[i].weight[:, :, j].T stacked over j).
        "wc": n(ks[3], (nums, 3 * width, width)),
        "gc": 1.0 + n(ks[4], (nums, 1, width), 0.05),
        "bec": n(ks[5], (nums, 1, width), 0.05),
        "w3": n(ks[6], (c_in, c_out)),
        "g3": 1.0 + n(ks[7], (1, c_out), 0.05),
        "be3": n(ks[8], (1, c_out), 0.05),
        "sew1": n(ks[9], (c_out, hidden)),         # SE Linear layers are bias=False
        "sew2": n(ks[10], (hidden, c_out)),
    }
    if c_in != c_out:
        k2 = jax.random.split(ks[11], 3)
        p.update({
            "wsc": n(k2[0], (c_in, c_out)),
            "gsc": 1.0 + n(k2[1], (1, c_out), 0.05),
            "besc": n(k2[2], (1, c_out), 0.05),
        })
    return p


def seres2block_forward(x_ncl, params, *, scale=8, se_ratio=16):
    """x_ncl: (B, C_in, T) float32 (PyTorch NCL).  Returns (B, C_out, T)."""
    B, c_in, T = x_ncl.shape
    BT = B * T
    c_out = params["w3"].shape[1]
    width = c_in // scale
    nums = scale - 1
    use_shortcut = "wsc" in params
    c_out_pad = _round_up(c_out, 128)                 # lane-dense output stores
    hidden = params["sew1"].shape[1]
    hidden_pad = _round_up(hidden, 128)

    # glue: channels-last + flatten (batch, time) rows
    x2d = jnp.transpose(x_ncl, (0, 2, 1)).reshape(BT, c_in).astype(jnp.float32)

    bf = lambda a: a.astype(jnp.bfloat16)             # matmul weights in bf16
    padc = lambda a: _pad_last(a, c_out_pad)          # zero-pad output-channel dim

    w3p = padc(params["w3"])
    sew1p = jnp.pad(params["sew1"],
                    ((0, c_out_pad - c_out), (0, hidden_pad - hidden)))
    sew2p = jnp.pad(params["sew2"],
                    ((0, hidden_pad - hidden), (0, c_out_pad - c_out)))

    if use_shortcut:
        # Fuse conv1 and shortcut conv weights: one matmul over x, split by columns.
        w1sc = jnp.concatenate([params["w1"], padc(params["wsc"])], axis=1)
        inputs = [
            x2d, bf(w1sc), params["g1"], params["be1"],
            padc(params["gsc"]), padc(params["besc"]),
            bf(params["wc"]), params["gc"], params["bec"],
            bf(w3p), padc(params["g3"]), padc(params["be3"]),
            bf(sew1p), bf(sew2p),
        ]
    else:
        inputs = [
            x2d, bf(params["w1"]), params["g1"], params["be1"],
            bf(params["wc"]), params["gc"], params["bec"],
            bf(w3p), padc(params["g3"]), padc(params["be3"]),
            bf(sew1p), bf(sew2p),
        ]

    # ---- resource hints: scoped VMEM budget + cost estimate ----
    bytes_in = sum(int(a.size) * a.dtype.itemsize for a in inputs)
    bytes_out = BT * c_out_pad * 4
    interm = BT * (2 * c_in            # out1 (bf16)
                   + 2 * c_in          # cat  (bf16)
                   + 2 * 3 * width     # a3   (bf16, transient)
                   + 4 * c_out_pad * 3)  # out3 / gated / residual (f32)
    vmem_limit = int(min(max(2 * (bytes_in + bytes_out) + interm + (2 << 20),
                             32 << 20), 96 << 20))

    flops = (2 * BT * c_in * (c_in + (c_out_pad if use_shortcut else 0))
             + 2 * BT * 3 * width * width * nums
             + 2 * BT * c_in * c_out_pad
             + 4 * B * c_out_pad * hidden_pad)
    transcendentals = B * c_out_pad + (nums * width + 2 * c_in + 2 * c_out_pad)

    vmem = pl.BlockSpec(memory_space=pltpu.MemorySpace.VMEM)
    out2d = pl.pallas_call(
        _make_kernel(B, T, scale, width, c_in, c_out_pad, use_shortcut),
        out_shape=jax.ShapeDtypeStruct((BT, c_out_pad), jnp.float32),
        in_specs=[vmem] * len(inputs),
        out_specs=vmem,
        compiler_params=pltpu.CompilerParams(vmem_limit_bytes=vmem_limit),
        cost_estimate=pl.CostEstimate(flops=int(flops),
                                      transcendentals=int(transcendentals),
                                      bytes_accessed=int(bytes_in + bytes_out)),
    )(*inputs)

    # strip channel padding, back to PyTorch NCL layout
    return out2d[:, :c_out].reshape(B, T, c_out).transpose(0, 2, 1)


if __name__ == "__main__":
    # small shapes consistent with the module: in_channels divisible by scale,
    # out_channels divisible by se_ratio; in != out exercises the conv shortcut
    # (and the fused conv1+shortcut matmul).
    B, C_IN, C_OUT, T, SCALE, SE_RATIO = 2, 64, 32, 16, 8, 16

    key = jax.random.PRNGKey(0)
    kx, kp = jax.random.split(key)
    x = jax.random.normal(kx, (B, C_IN, T), jnp.float32)
    params = init_params(kp, C_IN, C_OUT, scale=SCALE, se_ratio=SE_RATIO)

    out = seres2block_forward(x, params, scale=SCALE, se_ratio=SE_RATIO)
    out = jax.block_until_ready(out)

    assert out.shape == (B, C_OUT, T)
    assert bool(jnp.all(jnp.isfinite(out)))
    assert bool(jnp.all(out >= 0.0))  # final ReLU

    print("KERNEL_OK")
</pallas_src>

<mosaic_0001>
module attributes {stable_mosaic.version = 11 : i64} {
  func.func @kernel(%arg0: memref<32x64xf32, #tpu.memory_space<vmem>>, %arg1: memref<64x192xbf16, #tpu.memory_space<vmem>>, %arg2: memref<1x64xf32, #tpu.memory_space<vmem>>, %arg3: memref<1x64xf32, #tpu.memory_space<vmem>>, %arg4: memref<1x128xf32, #tpu.memory_space<vmem>>, %arg5: memref<1x128xf32, #tpu.memory_space<vmem>>, %arg6: memref<7x24x8xbf16, #tpu.memory_space<vmem>>, %arg7: memref<7x1x8xf32, #tpu.memory_space<vmem>>, %arg8: memref<7x1x8xf32, #tpu.memory_space<vmem>>, %arg9: memref<64x128xbf16, #tpu.memory_space<vmem>>, %arg10: memref<1x128xf32, #tpu.memory_space<vmem>>, %arg11: memref<1x128xf32, #tpu.memory_space<vmem>>, %arg12: memref<128x128xbf16, #tpu.memory_space<vmem>>, %arg13: memref<128x128xbf16, #tpu.memory_space<vmem>>, %arg14: memref<32x128xf32, #tpu.memory_space<vmem>>) attributes {dimension_semantics = [], scalar_prefetch = 0 : i64, scratch_operands = 0 : i64, tpu.core_type = #tpu.core_type<tc>} {
    %c0 = arith.constant 0 : index
    %c0_0 = arith.constant 0 : index
    %0 = vector.load %arg0[%c0, %c0_0] : memref<32x64xf32, #tpu.memory_space<vmem>>, vector<32x64xf32>
    %1 = arith.truncf %0 : vector<32x64xf32> to vector<32x64xbf16>
    %2 = tpu.iota {dimensions = array<i32: 0>} : vector<32x1xi32>
    %c16_i32 = arith.constant 16 : i32
    %c0_i32 = arith.constant 0 : i32
    %3 = arith.cmpi eq, %c16_i32, %c0_i32 : i32
    %c1_i32 = arith.constant 1 : i32
    %4 = arith.select %3, %c1_i32, %c16_i32 : i32
    %5 = vector.broadcast %4 : i32 to vector<32x1xi32>
    %6 = arith.remsi %2, %5 : vector<32x1xi32>
    %c0_i32_1 = arith.constant 0 : i32
    %7 = vector.broadcast %c0_i32_1 : i32 to vector<32x1xi32>
    %8 = arith.cmpi ne, %6, %7 : vector<32x1xi32>
    %c0_i32_2 = arith.constant 0 : i32
    %9 = vector.broadcast %c0_i32_2 : i32 to vector<32x1xi32>
    %10 = arith.cmpi slt, %6, %9 : vector<32x1xi32>
    %c0_i32_3 = arith.constant 0 : i32
    %11 = arith.cmpi slt, %4, %c0_i32_3 : i32
    %12 = vector.broadcast %11 : i1 to vector<32x1xi1>
    %13 = vector.broadcast %12 : vector<32x1xi1> to vector<32x1xi1>
    %14 = arith.xori %10, %13 : vector<32x1xi1>
    %15 = arith.andi %14, %8 : vector<32x1xi1>
    %16 = vector.broadcast %4 : i32 to vector<32x1xi32>
    %17 = arith.addi %6, %16 : vector<32x1xi32>
    %18 = arith.select %15, %17, %6 : vector<32x1xi1>, vector<32x1xi32>
    %c0_i32_4 = arith.constant 0 : i32
    %19 = vector.broadcast %c0_i32_4 : i32 to vector<32x1xi32>
    %20 = arith.cmpi sgt, %18, %19 : vector<32x1xi32>
    %21 = arith.extui %20 : vector<32x1xi1> to vector<32x1xi32>
    %22 = arith.sitofp %21 : vector<32x1xi32> to vector<32x1xf32>
    %23 = arith.truncf %22 : vector<32x1xf32> to vector<32x1xbf16>
    %c15_i32 = arith.constant 15 : i32
    %24 = vector.broadcast %c15_i32 : i32 to vector<32x1xi32>
    %25 = arith.cmpi slt, %18, %24 : vector<32x1xi32>
    %26 = arith.extui %25 : vector<32x1xi1> to vector<32x1xi32>
    %27 = arith.sitofp %26 : vector<32x1xi32> to vector<32x1xf32>
    %28 = arith.truncf %27 : vector<32x1xf32> to vector<32x1xbf16>
    %c0_5 = arith.constant 0 : index
    %c0_6 = arith.constant 0 : index
    %29 = vector.load %arg1[%c0_5, %c0_6] : memref<64x192xbf16, #tpu.memory_space<vmem>>, vector<64x192xbf16>
    %cst = arith.constant dense<0.000000e+00> : vector<32x192xf32>
    %30 = tpu.matmul %1, %29, %cst {dimension_numbers = #tpu.dot_dimension_numbers<[1], [0], [0], [1], [0, 0, 1, 1], [], []>} : vector<32x64xbf16>, vector<64x192xbf16>, vector<32x192xf32> -> vector<32x192xf32>
    %31 = vector.extract_strided_slice %30 {offsets = [0, 0], sizes = [32, 64], strides = [1, 1]} : vector<32x192xf32> to vector<32x64xf32>
    %32 = vector.extract_strided_slice %30 {offsets = [0, 64], sizes = [32, 128], strides = [1, 1]} : vector<32x192xf32> to vector<32x128xf32>
    %c0_7 = arith.constant 0 : index
    %c0_8 = arith.constant 0 : index
    %33 = vector.load %arg4[%c0_7, %c0_8] : memref<1x128xf32, #tpu.memory_space<vmem>>, vector<1x128xf32>
    %c0_9 = arith.constant 0 : index
    %c0_10 = arith.constant 0 : index
    %34 = vector.load %arg5[%c0_9, %c0_10] : memref<1x128xf32, #tpu.memory_space<vmem>>, vector<1x128xf32>
    %cst_11 = arith.constant dense<0.000000e+00> : vector<128xf32>
    %35 = vector.multi_reduction <add>, %32, %cst_11 [0] : vector<32x128xf32> to vector<128xf32>
    %36 = vector.shape_cast %35 : vector<128xf32> to vector<1x128xf32>
    %37 = arith.mulf %32, %32 : vector<32x128xf32>
    %cst_12 = arith.constant dense<0.000000e+00> : vector<128xf32>
    %38 = vector.multi_reduction <add>, %37, %cst_12 [0] : vector<32x128xf32> to vector<128xf32>
    %39 = vector.shape_cast %38 : vector<128xf32> to vector<1x128xf32>
    %cst_13 = arith.constant 3.125000e-02 : f32
    %40 = vector.broadcast %cst_13 : f32 to vector<1x128xf32>
    %41 = arith.mulf %36, %40 : vector<1x128xf32>
    %cst_14 = arith.constant 3.125000e-02 : f32
    %42 = vector.broadcast %cst_14 : f32 to vector<1x128xf32>
    %43 = arith.mulf %39, %42 : vector<1x128xf32>
    %44 = arith.mulf %41, %41 : vector<1x128xf32>
    %45 = arith.subf %43, %44 : vector<1x128xf32>
    %cst_15 = arith.constant 0.000000e+00 : f32
    %46 = vector.broadcast %cst_15 : f32 to vector<1x128xf32>
    %47 = arith.maximumf %45, %46 : vector<1x128xf32>
    %cst_16 = arith.constant 9.99999974E-6 : f32
    %48 = vector.broadcast %cst_16 : f32 to vector<1x128xf32>
    %49 = arith.addf %47, %48 : vector<1x128xf32>
    %50 = math.rsqrt %49 : vector<1x128xf32>
    %51 = arith.mulf %33, %50 : vector<1x128xf32>
    %52 = arith.mulf %41, %51 : vector<1x128xf32>
    %53 = arith.subf %34, %52 : vector<1x128xf32>
    %54 = vector.broadcast %51 : vector<1x128xf32> to vector<32x128xf32>
    %55 = arith.mulf %32, %54 : vector<32x128xf32>
    %56 = vector.broadcast %53 : vector<1x128xf32> to vector<32x128xf32>
    %57 = arith.addf %55, %56 : vector<32x128xf32>
    %c0_17 = arith.constant 0 : index
    %c0_18 = arith.constant 0 : index
    %58 = vector.load %arg2[%c0_17, %c0_18] : memref<1x64xf32, #tpu.memory_space<vmem>>, vector<1x64xf32>
    %c0_19 = arith.constant 0 : index
    %c0_20 = arith.constant 0 : index
    %59 = vector.load %arg3[%c0_19, %c0_20] : memref<1x64xf32, #tpu.memory_space<vmem>>, vector<1x64xf32>
    %cst_21 = arith.constant dense<0.000000e+00> : vector<64xf32>
    %60 = vector.multi_reduction <add>, %31, %cst_21 [0] : vector<32x64xf32> to vector<64xf32>
    %61 = vector.shape_cast %60 : vector<64xf32> to vector<1x64xf32>
    %62 = arith.mulf %31, %31 : vector<32x64xf32>
    %cst_22 = arith.constant dense<0.000000e+00> : vector<64xf32>
    %63 = vector.multi_reduction <add>, %62, %cst_22 [0] : vector<32x64xf32> to vector<64xf32>
    %64 = vector.shape_cast %63 : vector<64xf32> to vector<1x64xf32>
    %cst_23 = arith.constant 3.125000e-02 : f32
    %65 = vector.broadcast %cst_23 : f32 to vector<1x64xf32>
    %66 = arith.mulf %61, %65 : vector<1x64xf32>
    %cst_24 = arith.constant 3.125000e-02 : f32
    %67 = vector.broadcast %cst_24 : f32 to vector<1x64xf32>
    %68 = arith.mulf %64, %67 : vector<1x64xf32>
    %69 = arith.mulf %66, %66 : vector<1x64xf32>
    %70 = arith.subf %68, %69 : vector<1x64xf32>
    %cst_25 = arith.constant 0.000000e+00 : f32
    %71 = vector.broadcast %cst_25 : f32 to vector<1x64xf32>
    %72 = arith.maximumf %70, %71 : vector<1x64xf32>
    %cst_26 = arith.constant 9.99999974E-6 : f32
    %73 = vector.broadcast %cst_26 : f32 to vector<1x64xf32>
    %74 = arith.addf %72, %73 : vector<1x64xf32>
    %75 = math.rsqrt %74 : vector<1x64xf32>
    %76 = arith.mulf %58, %75 : vector<1x64xf32>
    %77 = arith.mulf %66, %76 : vector<1x64xf32>
    %78 = arith.subf %59, %77 : vector<1x64xf32>
    %79 = vector.broadcast %76 : vector<1x64xf32> to vector<32x64xf32>
    %80 = arith.mulf %31, %79 : vector<32x64xf32>
    %81 = vector.broadcast %78 : vector<1x64xf32> to vector<32x64xf32>
    %82 = arith.addf %80, %81 : vector<32x64xf32>
    %cst_27 = arith.constant 0.000000e+00 : f32
    %83 = vector.broadcast %cst_27 : f32 to vector<32x64xf32>
    %84 = arith.maximumf %82, %83 : vector<32x64xf32>
    %85 = arith.truncf %84 : vector<32x64xf32> to vector<32x64xbf16>
    %cst_28 = arith.constant 0.000000e+00 : bf16
    %86 = vector.broadcast %cst_28 : bf16 to vector<1x8xbf16>
    %87 = vector.extract_strided_slice %85 {offsets = [0, 0], sizes = [32, 8], strides = [1, 1]} : vector<32x64xbf16> to vector<32x8xbf16>
    %88 = vector.extract_strided_slice %87 {offsets = [0, 0], sizes = [31, 8], strides = [1, 1]} : vector<32x8xbf16> to vector<31x8xbf16>
    %89 = tpu.concatenate %86, %88 in 0 : vector<1x8xbf16>, vector<31x8xbf16> -> vector<32x8xbf16>
    %90 = vector.broadcast %23 : vector<32x1xbf16> to vector<32x8xbf16>
    %91 = arith.mulf %89, %90 : vector<32x8xbf16>
    %92 = vector.extract_strided_slice %87 {offsets = [1, 0], sizes = [31, 8], strides = [1, 1]} : vector<32x8xbf16> to vector<31x8xbf16>
    %93 = tpu.concatenate %92, %86 in 0 : vector<31x8xbf16>, vector<1x8xbf16> -> vector<32x8xbf16>
    %94 = vector.broadcast %28 : vector<32x1xbf16> to vector<32x8xbf16>
    %95 = arith.mulf %93, %94 : vector<32x8xbf16>
    %96 = tpu.concatenate %91, %87, %95 in 1 : vector<32x8xbf16>, vector<32x8xbf16>, vector<32x8xbf16> -> vector<32x24xbf16>
    %c0_29 = arith.constant 0 : index
    %c0_30 = arith.constant 0 : index
    %c0_31 = arith.constant 0 : index
    %97 = vector.load %arg6[%c0_29, %c0_30, %c0_31] : memref<7x24x8xbf16, #tpu.memory_space<vmem>>, vector<1x24x8xbf16>
    %98 = vector.shape_cast %97 : vector<1x24x8xbf16> to vector<24x8xbf16>
    %cst_32 = arith.constant dense<0.000000e+00> : vector<32x8xf32>
    %99 = tpu.matmul %96, %98, %cst_32 {dimension_numbers = #tpu.dot_dimension_numbers<[1], [0], [0], [1], [0, 0, 1, 1], [], []>} : vector<32x24xbf16>, vector<24x8xbf16>, vector<32x8xf32> -> vector<32x8xf32>
    %c0_33 = arith.constant 0 : index
    %c0_34 = arith.constant 0 : index
    %c0_35 = arith.constant 0 : index
    %100 = vector.load %arg7[%c0_33, %c0_34, %c0_35] : memref<7x1x8xf32, #tpu.memory_space<vmem>>, vector<1x1x8xf32>
    %101 = vector.shape_cast %100 : vector<1x1x8xf32> to vector<1x8xf32>
    %c0_36 = arith.constant 0 : index
    %c0_37 = arith.constant 0 : index
    %c0_38 = arith.constant 0 : index
    %102 = vector.load %arg8[%c0_36, %c0_37, %c0_38] : memref<7x1x8xf32, #tpu.memory_space<vmem>>, vector<1x1x8xf32>
    %103 = vector.shape_cast %102 : vector<1x1x8xf32> to vector<1x8xf32>
    %cst_39 = arith.constant dense<0.000000e+00> : vector<8xf32>
    %104 = vector.multi_reduction <add>, %99, %cst_39 [0] : vector<32x8xf32> to vector<8xf32>
    %105 = vector.shape_cast %104 : vector<8xf32> to vector<1x8xf32>
    %106 = arith.mulf %99, %99 : vector<32x8xf32>
    %cst_40 = arith.constant dense<0.000000e+00> : vector<8xf32>
    %107 = vector.multi_reduction <add>, %106, %cst_40 [0] : vector<32x8xf32> to vector<8xf32>
    %108 = vector.shape_cast %107 : vector<8xf32> to vector<1x8xf32>
    %cst_41 = arith.constant 3.125000e-02 : f32
    %109 = vector.broadcast %cst_41 : f32 to vector<1x8xf32>
    %110 = arith.mulf %105, %109 : vector<1x8xf32>
    %cst_42 = arith.constant 3.125000e-02 : f32
    %111 = vector.broadcast %cst_42 : f32 to vector<1x8xf32>
    %112 = arith.mulf %108, %111 : vector<1x8xf32>
    %113 = arith.mulf %110, %110 : vector<1x8xf32>
    %114 = arith.subf %112, %113 : vector<1x8xf32>
    %cst_43 = arith.constant 0.000000e+00 : f32
    %115 = vector.broadcast %cst_43 : f32 to vector<1x8xf32>
    %116 = arith.maximumf %114, %115 : vector<1x8xf32>
    %cst_44 = arith.constant 9.99999974E-6 : f32
    %117 = vector.broadcast %cst_44 : f32 to vector<1x8xf32>
    %118 = arith.addf %116, %117 : vector<1x8xf32>
    %119 = math.rsqrt %118 : vector<1x8xf32>
    %120 = arith.mulf %101, %119 : vector<1x8xf32>
    %121 = arith.mulf %110, %120 : vector<1x8xf32>
    %122 = arith.subf %103, %121 : vector<1x8xf32>
    %123 = vector.broadcast %120 : vector<1x8xf32> to vector<32x8xf32>
    %124 = arith.mulf %99, %123 : vector<32x8xf32>
    %125 = vector.broadcast %122 : vector<1x8xf32> to vector<32x8xf32>
    %126 = arith.addf %124, %125 : vector<32x8xf32>
    %cst_45 = arith.constant 0.000000e+00 : f32
    %127 = vector.broadcast %cst_45 : f32 to vector<32x8xf32>
    %128 = arith.maximumf %126, %127 : vector<32x8xf32>
    %129 = arith.truncf %128 : vector<32x8xf32> to vector<32x8xbf16>
    %130 = vector.extract_strided_slice %85 {offsets = [0, 8], sizes = [32, 8], strides = [1, 1]} : vector<32x64xbf16> to vector<32x8xbf16>
    %131 = arith.addf %129, %130 : vector<32x8xbf16>
    %132 = vector.extract_strided_slice %131 {offsets = [0, 0], sizes = [31, 8], strides = [1, 1]} : vector<32x8xbf16> to vector<31x8xbf16>
    %133 = tpu.concatenate %86, %132 in 0 : vector<1x8xbf16>, vector<31x8xbf16> -> vector<32x8xbf16>
    %134 = vector.broadcast %23 : vector<32x1xbf16> to vector<32x8xbf16>
    %135 = arith.mulf %133, %134 : vector<32x8xbf16>
    %136 = vector.extract_strided_slice %131 {offsets = [1, 0], sizes = [31, 8], strides = [1, 1]} : vector<32x8xbf16> to vector<31x8xbf16>
    %137 = tpu.concatenate %136, %86 in 0 : vector<31x8xbf16>, vector<1x8xbf16> -> vector<32x8xbf16>
    %138 = vector.broadcast %28 : vector<32x1xbf16> to vector<32x8xbf16>
    %139 = arith.mulf %137, %138 : vector<32x8xbf16>
    %140 = tpu.concatenate %135, %131, %139 in 1 : vector<32x8xbf16>, vector<32x8xbf16>, vector<32x8xbf16> -> vector<32x24xbf16>
    %c1 = arith.constant 1 : index
    %c0_46 = arith.constant 0 : index
    %c0_47 = arith.constant 0 : index
    %141 = vector.load %arg6[%c1, %c0_46, %c0_47] : memref<7x24x8xbf16, #tpu.memory_space<vmem>>, vector<1x24x8xbf16>
    %142 = vector.shape_cast %141 : vector<1x24x8xbf16> to vector<24x8xbf16>
    %cst_48 = arith.constant dense<0.000000e+00> : vector<32x8xf32>
    %143 = tpu.matmul %140, %142, %cst_48 {dimension_numbers = #tpu.dot_dimension_numbers<[1], [0], [0], [1], [0, 0, 1, 1], [], []>} : vector<32x24xbf16>, vector<24x8xbf16>, vector<32x8xf32> -> vector<32x8xf32>
    %c1_49 = arith.constant 1 : index
    %c0_50 = arith.constant 0 : index
    %c0_51 = arith.constant 0 : index
    %144 = vector.load %arg7[%c1_49, %c0_50, %c0_51] : memref<7x1x8xf32, #tpu.memory_space<vmem>>, vector<1x1x8xf32>
    %145 = vector.shape_cast %144 : vector<1x1x8xf32> to vector<1x8xf32>
    %c1_52 = arith.constant 1 : index
    %c0_53 = arith.constant 0 : index
    %c0_54 = arith.constant 0 : index
    %146 = vector.load %arg8[%c1_52, %c0_53, %c0_54] : memref<7x1x8xf32, #tpu.memory_space<vmem>>, vector<1x1x8xf32>
    %147 = vector.shape_cast %146 : vector<1x1x8xf32> to vector<1x8xf32>
    %cst_55 = arith.constant dense<0.000000e+00> : vector<8xf32>
    %148 = vector.multi_reduction <add>, %143, %cst_55 [0] : vector<32x8xf32> to vector<8xf32>
    %149 = vector.shape_cast %148 : vector<8xf32> to vector<1x8xf32>
    %150 = arith.mulf %143, %143 : vector<32x8xf32>
    %cst_56 = arith.constant dense<0.000000e+00> : vector<8xf32>
    %151 = vector.multi_reduction <add>, %150, %cst_56 [0] : vector<32x8xf32> to vector<8xf32>
    %152 = vector.shape_cast %151 : vector<8xf32> to vector<1x8xf32>
    %cst_57 = arith.constant 3.125000e-02 : f32
    %153 = vector.broadcast %cst_57 : f32 to vector<1x8xf32>
    %154 = arith.mulf %149, %153 : vector<1x8xf32>
    %cst_58 = arith.constant 3.125000e-02 : f32
    %155 = vector.broadcast %cst_58 : f32 to vector<1x8xf32>
    %156 = arith.mulf %152, %155 : vector<1x8xf32>
    %157 = arith.mulf %154, %154 : vector<1x8xf32>
    %158 = arith.subf %156, %157 : vector<1x8xf32>
    %cst_59 = arith.constant 0.000000e+00 : f32
    %159 = vector.broadcast %cst_59 : f32 to vector<1x8xf32>
    %160 = arith.maximumf %158, %159 : vector<1x8xf32>
    %cst_60 = arith.constant 9.99999974E-6 : f32
    %161 = vector.broadcast %cst_60 : f32 to vector<1x8xf32>
    %162 = arith.addf %160, %161 : vector<1x8xf32>
    %163 = math.rsqrt %162 : vector<1x8xf32>
    %164 = arith.mulf %145, %163 : vector<1x8xf32>
    %165 = arith.mulf %154, %164 : vector<1x8xf32>
    %166 = arith.subf %147, %165 : vector<1x8xf32>
    %167 = vector.broadcast %164 : vector<1x8xf32> to vector<32x8xf32>
    %168 = arith.mulf %143, %167 : vector<32x8xf32>
    %169 = vector.broadcast %166 : vector<1x8xf32> to vector<32x8xf32>
    %170 = arith.addf %168, %169 : vector<32x8xf32>
    %cst_61 = arith.constant 0.000000e+00 : f32
    %171 = vector.broadcast %cst_61 : f32 to vector<32x8xf32>
    %172 = arith.maximumf %170, %171 : vector<32x8xf32>
    %173 = arith.truncf %172 : vector<32x8xf32> to vector<32x8xbf16>
    %174 = vector.extract_strided_slice %85 {offsets = [0, 16], sizes = [32, 8], strides = [1, 1]} : vector<32x64xbf16> to vector<32x8xbf16>
    %175 = arith.addf %173, %174 : vector<32x8xbf16>
    %176 = vector.extract_strided_slice %175 {offsets = [0, 0], sizes = [31, 8], strides = [1, 1]} : vector<32x8xbf16> to vector<31x8xbf16>
    %177 = tpu.concatenate %86, %176 in 0 : vector<1x8xbf16>, vector<31x8xbf16> -> vector<32x8xbf16>
    %178 = vector.broadcast %23 : vector<32x1xbf16> to vector<32x8xbf16>
    %179 = arith.mulf %177, %178 : vector<32x8xbf16>
    %180 = vector.extract_strided_slice %175 {offsets = [1, 0], sizes = [31, 8], strides = [1, 1]} : vector<32x8xbf16> to vector<31x8xbf16>
    %181 = tpu.concatenate %180, %86 in 0 : vector<31x8xbf16>, vector<1x8xbf16> -> vector<32x8xbf16>
    %182 = vector.broadcast %28 : vector<32x1xbf16> to vector<32x8xbf16>
    %183 = arith.mulf %181, %182 : vector<32x8xbf16>
    %184 = tpu.concatenate %179, %175, %183 in 1 : vector<32x8xbf16>, vector<32x8xbf16>, vector<32x8xbf16> -> vector<32x24xbf16>
    %c2 = arith.constant 2 : index
    %c0_62 = arith.constant 0 : index
    %c0_63 = arith.constant 0 : index
    %185 = vector.load %arg6[%c2, %c0_62, %c0_63] : memref<7x24x8xbf16, #tpu.memory_space<vmem>>, vector<1x24x8xbf16>
    %186 = vector.shape_cast %185 : vector<1x24x8xbf16> to vector<24x8xbf16>
    %cst_64 = arith.constant dense<0.000000e+00> : vector<32x8xf32>
    %187 = tpu.matmul %184, %186, %cst_64 {dimension_numbers = #tpu.dot_dimension_numbers<[1], [0], [0], [1], [0, 0, 1, 1], [], []>} : vector<32x24xbf16>, vector<24x8xbf16>, vector<32x8xf32> -> vector<32x8xf32>
    %c2_65 = arith.constant 2 : index
    %c0_66 = arith.constant 0 : index
    %c0_67 = arith.constant 0 : index
    %188 = vector.load %arg7[%c2_65, %c0_66, %c0_67] : memref<7x1x8xf32, #tpu.memory_space<vmem>>, vector<1x1x8xf32>
    %189 = vector.shape_cast %188 : vector<1x1x8xf32> to vector<1x8xf32>
    %c2_68 = arith.constant 2 : index
    %c0_69 = arith.constant 0 : index
    %c0_70 = arith.constant 0 : index
    %190 = vector.load %arg8[%c2_68, %c0_69, %c0_70] : memref<7x1x8xf32, #tpu.memory_space<vmem>>, vector<1x1x8xf32>
    %191 = vector.shape_cast %190 : vector<1x1x8xf32> to vector<1x8xf32>
    %cst_71 = arith.constant dense<0.000000e+00> : vector<8xf32>
    %192 = vector.multi_reduction <add>, %187, %cst_71 [0] : vector<32x8xf32> to vector<8xf32>
    %193 = vector.shape_cast %192 : vector<8xf32> to vector<1x8xf32>
    %194 = arith.mulf %187, %187 : vector<32x8xf32>
    %cst_72 = arith.constant dense<0.000000e+00> : vector<8xf32>
    %195 = vector.multi_reduction <add>, %194, %cst_72 [0] : vector<32x8xf32> to vector<8xf32>
    %196 = vector.shape_cast %195 : vector<8xf32> to vector<1x8xf32>
    %cst_73 = arith.constant 3.125000e-02 : f32
    %197 = vector.broadcast %cst_73 : f32 to vector<1x8xf32>
    %198 = arith.mulf %193, %197 : vector<1x8xf32>
    %cst_74 = arith.constant 3.125000e-02 : f32
    %199 = vector.broadcast %cst_74 : f32 to vector<1x8xf32>
    %200 = arith.mulf %196, %199 : vector<1x8xf32>
    %201 = arith.mulf %198, %198 : vector<1x8xf32>
    %202 = arith.subf %200, %201 : vector<1x8xf32>
    %cst_75 = arith.constant 0.000000e+00 : f32
    %203 = vector.broadcast %cst_75 : f32 to vector<1x8xf32>
    %204 = arith.maximumf %202, %203 : vector<1x8xf32>
    %cst_76 = arith.constant 9.99999974E-6 : f32
    %205 = vector.broadcast %cst_76 : f32 to vector<1x8xf32>
    %206 = arith.addf %204, %205 : vector<1x8xf32>
    %207 = math.rsqrt %206 : vector<1x8xf32>
    %208 = arith.mulf %189, %207 : vector<1x8xf32>
    %209 = arith.mulf %198, %208 : vector<1x8xf32>
    %210 = arith.subf %191, %209 : vector<1x8xf32>
    %211 = vector.broadcast %208 : vector<1x8xf32> to vector<32x8xf32>
    %212 = arith.mulf %187, %211 : vector<32x8xf32>
    %213 = vector.broadcast %210 : vector<1x8xf32> to vector<32x8xf32>
    %214 = arith.addf %212, %213 : vector<32x8xf32>
    %cst_77 = arith.constant 0.000000e+00 : f32
    %215 = vector.broadcast %cst_77 : f32 to vector<32x8xf32>
    %216 = arith.maximumf %214, %215 : vector<32x8xf32>
    %217 = arith.truncf %216 : vector<32x8xf32> to vector<32x8xbf16>
    %218 = vector.extract_strided_slice %85 {offsets = [0, 24], sizes = [32, 8], strides = [1, 1]} : vector<32x64xbf16> to vector<32x8xbf16>
    %219 = arith.addf %217, %218 : vector<32x8xbf16>
    %220 = vector.extract_strided_slice %219 {offsets = [0, 0], sizes = [31, 8], strides = [1, 1]} : vector<32x8xbf16> to vector<31x8xbf16>
    %221 = tpu.concatenate %86, %220 in 0 : vector<1x8xbf16>, vector<31x8xbf16> -> vector<32x8xbf16>
    %222 = vector.broadcast %23 : vector<32x1xbf16> to vector<32x8xbf16>
    %223 = arith.mulf %221, %222 : vector<32x8xbf16>
    %224 = vector.extract_strided_slice %219 {offsets = [1, 0], sizes = [31, 8], strides = [1, 1]} : vector<32x8xbf16> to vector<31x8xbf16>
    %225 = tpu.concatenate %224, %86 in 0 : vector<31x8xbf16>, vector<1x8xbf16> -> vector<32x8xbf16>
    %226 = vector.broadcast %28 : vector<32x1xbf16> to vector<32x8xbf16>
    %227 = arith.mulf %225, %226 : vector<32x8xbf16>
    %228 = tpu.concatenate %223, %219, %227 in 1 : vector<32x8xbf16>, vector<32x8xbf16>, vector<32x8xbf16> -> vector<32x24xbf16>
    %c3 = arith.constant 3 : index
    %c0_78 = arith.constant 0 : index
    %c0_79 = arith.constant 0 : index
    %229 = vector.load %arg6[%c3, %c0_78, %c0_79] : memref<7x24x8xbf16, #tpu.memory_space<vmem>>, vector<1x24x8xbf16>
    %230 = vector.shape_cast %229 : vector<1x24x8xbf16> to vector<24x8xbf16>
    %cst_80 = arith.constant dense<0.000000e+00> : vector<32x8xf32>
    %231 = tpu.matmul %228, %230, %cst_80 {dimension_numbers = #tpu.dot_dimension_numbers<[1], [0], [0], [1], [0, 0, 1, 1], [], []>} : vector<32x24xbf16>, vector<24x8xbf16>, vector<32x8xf32> -> vector<32x8xf32>
    %c3_81 = arith.constant 3 : index
    %c0_82 = arith.constant 0 : index
    %c0_83 = arith.constant 0 : index
    %232 = vector.load %arg7[%c3_81, %c0_82, %c0_83] : memref<7x1x8xf32, #tpu.memory_space<vmem>>, vector<1x1x8xf32>
    %233 = vector.shape_cast %232 : vector<1x1x8xf32> to vector<1x8xf32>
    %c3_84 = arith.constant 3 : index
    %c0_85 = arith.constant 0 : index
    %c0_86 = arith.constant 0 : index
    %234 = vector.load %arg8[%c3_84, %c0_85, %c0_86] : memref<7x1x8xf32, #tpu.memory_space<vmem>>, vector<1x1x8xf32>
    %235 = vector.shape_cast %234 : vector<1x1x8xf32> to vector<1x8xf32>
    %cst_87 = arith.constant dense<0.000000e+00> : vector<8xf32>
    %236 = vector.multi_reduction <add>, %231, %cst_87 [0] : vector<32x8xf32> to vector<8xf32>
    %237 = vector.shape_cast %236 : vector<8xf32> to vector<1x8xf32>
    %238 = arith.mulf %231, %231 : vector<32x8xf32>
    %cst_88 = arith.constant dense<0.000000e+00> : vector<8xf32>
    %239 = vector.multi_reduction <add>, %238, %cst_88 [0] : vector<32x8xf32> to vector<8xf32>
    %240 = vector.shape_cast %239 : vector<8xf32> to vector<1x8xf32>
    %cst_89 = arith.constant 3.125000e-02 : f32
    %241 = vector.broadcast %cst_89 : f32 to vector<1x8xf32>
    %242 = arith.mulf %237, %241 : vector<1x8xf32>
    %cst_90 = arith.constant 3.125000e-02 : f32
    %243 = vector.broadcast %cst_90 : f32 to vector<1x8xf32>
    %244 = arith.mulf %240, %243 : vector<1x8xf32>
    %245 = arith.mulf %242, %242 : vector<1x8xf32>
    %246 = arith.subf %244, %245 : vector<1x8xf32>
    %cst_91 = arith.constant 0.000000e+00 : f32
    %247 = vector.broadcast %cst_91 : f32 to vector<1x8xf32>
    %248 = arith.maximumf %246, %247 : vector<1x8xf32>
    %cst_92 = arith.constant 9.99999974E-6 : f32
    %249 = vector.broadcast %cst_92 : f32 to vector<1x8xf32>
    %250 = arith.addf %248, %249 : vector<1x8xf32>
    %251 = math.rsqrt %250 : vector<1x8xf32>
    %252 = arith.mulf %233, %251 : vector<1x8xf32>
    %253 = arith.mulf %242, %252 : vector<1x8xf32>
    %254 = arith.subf %235, %253 : vector<1x8xf32>
    %255 = vector.broadcast %252 : vector<1x8xf32> to vector<32x8xf32>
    %256 = arith.mulf %231, %255 : vector<32x8xf32>
    %257 = vector.broadcast %254 : vector<1x8xf32> to vector<32x8xf32>
    %258 = arith.addf %256, %257 : vector<32x8xf32>
    %cst_93 = arith.constant 0.000000e+00 : f32
    %259 = vector.broadcast %cst_93 : f32 to vector<32x8xf32>
    %260 = arith.maximumf %258, %259 : vector<32x8xf32>
    %261 = arith.truncf %260 : vector<32x8xf32> to vector<32x8xbf16>
    %262 = vector.extract_strided_slice %85 {offsets = [0, 32], sizes = [32, 8], strides = [1, 1]} : vector<32x64xbf16> to vector<32x8xbf16>
    %263 = arith.addf %261, %262 : vector<32x8xbf16>
    %264 = vector.extract_strided_slice %263 {offsets = [0, 0], sizes = [31, 8], strides = [1, 1]} : vector<32x8xbf16> to vector<31x8xbf16>
    %265 = tpu.concatenate %86, %264 in 0 : vector<1x8xbf16>, vector<31x8xbf16> -> vector<32x8xbf16>
    %266 = vector.broadcast %23 : vector<32x1xbf16> to vector<32x8xbf16>
    %267 = arith.mulf %265, %266 : vector<32x8xbf16>
    %268 = vector.extract_strided_slice %263 {offsets = [1, 0], sizes = [31, 8], strides = [1, 1]} : vector<32x8xbf16> to vector<31x8xbf16>
    %269 = tpu.concatenate %268, %86 in 0 : vector<31x8xbf16>, vector<1x8xbf16> -> vector<32x8xbf16>
    %270 = vector.broadcast %28 : vector<32x1xbf16> to vector<32x8xbf16>
    %271 = arith.mulf %269, %270 : vector<32x8xbf16>
    %272 = tpu.concatenate %267, %263, %271 in 1 : vector<32x8xbf16>, vector<32x8xbf16>, vector<32x8xbf16> -> vector<32x24xbf16>
    %c4 = arith.constant 4 : index
    %c0_94 = arith.constant 0 : index
    %c0_95 = arith.constant 0 : index
    %273 = vector.load %arg6[%c4, %c0_94, %c0_95] : memref<7x24x8xbf16, #tpu.memory_space<vmem>>, vector<1x24x8xbf16>
    %274 = vector.shape_cast %273 : vector<1x24x8xbf16> to vector<24x8xbf16>
    %cst_96 = arith.constant dense<0.000000e+00> : vector<32x8xf32>
    %275 = tpu.matmul %272, %274, %cst_96 {dimension_numbers = #tpu.dot_dimension_numbers<[1], [0], [0], [1], [0, 0, 1, 1], [], []>} : vector<32x24xbf16>, vector<24x8xbf16>, vector<32x8xf32> -> vector<32x8xf32>
    %c4_97 = arith.constant 4 : index
    %c0_98 = arith.constant 0 : index
    %c0_99 = arith.constant 0 : index
    %276 = vector.load %arg7[%c4_97, %c0_98, %c0_99] : memref<7x1x8xf32, #tpu.memory_space<vmem>>, vector<1x1x8xf32>
    %277 = vector.shape_cast %276 : vector<1x1x8xf32> to vector<1x8xf32>
    %c4_100 = arith.constant 4 : index
    %c0_101 = arith.constant 0 : index
    %c0_102 = arith.constant 0 : index
    %278 = vector.load %arg8[%c4_100, %c0_101, %c0_102] : memref<7x1x8xf32, #tpu.memory_space<vmem>>, vector<1x1x8xf32>
    %279 = vector.shape_cast %278 : vector<1x1x8xf32> to vector<1x8xf32>
    %cst_103 = arith.constant dense<0.000000e+00> : vector<8xf32>
    %280 = vector.multi_reduction <add>, %275, %cst_103 [0] : vector<32x8xf32> to vector<8xf32>
    %281 = vector.shape_cast %280 : vector<8xf32> to vector<1x8xf32>
    %282 = arith.mulf %275, %275 : vector<32x8xf32>
    %cst_104 = arith.constant dense<0.000000e+00> : vector<8xf32>
    %283 = vector.multi_reduction <add>, %282, %cst_104 [0] : vector<32x8xf32> to vector<8xf32>
    %284 = vector.shape_cast %283 : vector<8xf32> to vector<1x8xf32>
    %cst_105 = arith.constant 3.125000e-02 : f32
    %285 = vector.broadcast %cst_105 : f32 to vector<1x8xf32>
    %286 = arith.mulf %281, %285 : vector<1x8xf32>
    %cst_106 = arith.constant 3.125000e-02 : f32
    %287 = vector.broadcast %cst_106 : f32 to vector<1x8xf32>
    %288 = arith.mulf %284, %287 : vector<1x8xf32>
    %289 = arith.mulf %286, %286 : vector<1x8xf32>
    %290 = arith.subf %288, %289 : vector<1x8xf32>
    %cst_107 = arith.constant 0.000000e+00 : f32
    %291 = vector.broadcast %cst_107 : f32 to vector<1x8xf32>
    %292 = arith.maximumf %290, %291 : vector<1x8xf32>
    %cst_108 = arith.constant 9.99999974E-6 : f32
    %293 = vector.broadcast %cst_108 : f32 to vector<1x8xf32>
    %294 = arith.addf %292, %293 : vector<1x8xf32>
    %295 = math.rsqrt %294 : vector<1x8xf32>
    %296 = arith.mulf %277, %295 : vector<1x8xf32>
    %297 = arith.mulf %286, %296 : vector<1x8xf32>
    %298 = arith.subf %279, %297 : vector<1x8xf32>
    %299 = vector.broadcast %296 : vector<1x8xf32> to vector<32x8xf32>
    %300 = arith.mulf %275, %299 : vector<32x8xf32>
    %301 = vector.broadcast %298 : vector<1x8xf32> to vector<32x8xf32>
    %302 = arith.addf %300, %301 : vector<32x8xf32>
    %cst_109 = arith.constant 0.000000e+00 : f32
    %303 = vector.broadcast %cst_109 : f32 to vector<32x8xf32>
    %304 = arith.maximumf %302, %303 : vector<32x8xf32>
    %305 = arith.truncf %304 : vector<32x8xf32> to vector<32x8xbf16>
    %306 = vector.extract_strided_slice %85 {offsets = [0, 40], sizes = [32, 8], strides = [1, 1]} : vector<32x64xbf16> to vector<32x8xbf16>
    %307 = arith.addf %305, %306 : vector<32x8xbf16>
    %308 = vector.extract_strided_slice %307 {offsets = [0, 0], sizes = [31, 8], strides = [1, 1]} : vector<32x8xbf16> to vector<31x8xbf16>
    %309 = tpu.concatenate %86, %308 in 0 : vector<1x8xbf16>, vector<31x8xbf16> -> vector<32x8xbf16>
    %310 = vector.broadcast %23 : vector<32x1xbf16> to vector<32x8xbf16>
    %311 = arith.mulf %309, %310 : vector<32x8xbf16>
    %312 = vector.extract_strided_slice %307 {offsets = [1, 0], sizes = [31, 8], strides = [1, 1]} : vector<32x8xbf16> to vector<31x8xbf16>
    %313 = tpu.concatenate %312, %86 in 0 : vector<31x8xbf16>, vector<1x8xbf16> -> vector<32x8xbf16>
    %314 = vector.broadcast %28 : vector<32x1xbf16> to vector<32x8xbf16>
    %315 = arith.mulf %313, %314 : vector<32x8xbf16>
    %316 = tpu.concatenate %311, %307, %315 in 1 : vector<32x8xbf16>, vector<32x8xbf16>, vector<32x8xbf16> -> vector<32x24xbf16>
    %c5 = arith.constant 5 : index
    %c0_110 = arith.constant 0 : index
    %c0_111 = arith.constant 0 : index
    %317 = vector.load %arg6[%c5, %c0_110, %c0_111] : memref<7x24x8xbf16, #tpu.memory_space<vmem>>, vector<1x24x8xbf16>
    %318 = vector.shape_cast %317 : vector<1x24x8xbf16> to vector<24x8xbf16>
    %cst_112 = arith.constant dense<0.000000e+00> : vector<32x8xf32>
    %319 = tpu.matmul %316, %318, %cst_112 {dimension_numbers = #tpu.dot_dimension_numbers<[1], [0], [0], [1], [0, 0, 1, 1], [], []>} : vector<32x24xbf16>, vector<24x8xbf16>, vector<32x8xf32> -> vector<32x8xf32>
    %c5_113 = arith.constant 5 : index
    %c0_114 = arith.constant 0 : index
    %c0_115 = arith.constant 0 : index
    %320 = vector.load %arg7[%c5_113, %c0_114, %c0_115] : memref<7x1x8xf32, #tpu.memory_space<vmem>>, vector<1x1x8xf32>
    %321 = vector.shape_cast %320 : vector<1x1x8xf32> to vector<1x8xf32>
    %c5_116 = arith.constant 5 : index
    %c0_117 = arith.constant 0 : index
    %c0_118 = arith.constant 0 : index
    %322 = vector.load %arg8[%c5_116, %c0_117, %c0_118] : memref<7x1x8xf32, #tpu.memory_space<vmem>>, vector<1x1x8xf32>
    %323 = vector.shape_cast %322 : vector<1x1x8xf32> to vector<1x8xf32>
    %cst_119 = arith.constant dense<0.000000e+00> : vector<8xf32>
    %324 = vector.multi_reduction <add>, %319, %cst_119 [0] : vector<32x8xf32> to vector<8xf32>
    %325 = vector.shape_cast %324 : vector<8xf32> to vector<1x8xf32>
    %326 = arith.mulf %319, %319 : vector<32x8xf32>
    %cst_120 = arith.constant dense<0.000000e+00> : vector<8xf32>
    %327 = vector.multi_reduction <add>, %326, %cst_120 [0] : vector<32x8xf32> to vector<8xf32>
    %328 = vector.shape_cast %327 : vector<8xf32> to vector<1x8xf32>
    %cst_121 = arith.constant 3.125000e-02 : f32
    %329 = vector.broadcast %cst_121 : f32 to vector<1x8xf32>
    %330 = arith.mulf %325, %329 : vector<1x8xf32>
    %cst_122 = arith.constant 3.125000e-02 : f32
    %331 = vector.broadcast %cst_122 : f32 to vector<1x8xf32>
    %332 = arith.mulf %328, %331 : vector<1x8xf32>
    %333 = arith.mulf %330, %330 : vector<1x8xf32>
    %334 = arith.subf %332, %333 : vector<1x8xf32>
    %cst_123 = arith.constant 0.000000e+00 : f32
    %335 = vector.broadcast %cst_123 : f32 to vector<1x8xf32>
    %336 = arith.maximumf %334, %335 : vector<1x8xf32>
    %cst_124 = arith.constant 9.99999974E-6 : f32
    %337 = vector.broadcast %cst_124 : f32 to vector<1x8xf32>
    %338 = arith.addf %336, %337 : vector<1x8xf32>
    %339 = math.rsqrt %338 : vector<1x8xf32>
    %340 = arith.mulf %321, %339 : vector<1x8xf32>
    %341 = arith.mulf %330, %340 : vector<1x8xf32>
    %342 = arith.subf %323, %341 : vector<1x8xf32>
    %343 = vector.broadcast %340 : vector<1x8xf32> to vector<32x8xf32>
    %344 = arith.mulf %319, %343 : vector<32x8xf32>
    %345 = vector.broadcast %342 : vector<1x8xf32> to vector<32x8xf32>
    %346 = arith.addf %344, %345 : vector<32x8xf32>
    %cst_125 = arith.constant 0.000000e+00 : f32
    %347 = vector.broadcast %cst_125 : f32 to vector<32x8xf32>
    %348 = arith.maximumf %346, %347 : vector<32x8xf32>
    %349 = arith.truncf %348 : vector<32x8xf32> to vector<32x8xbf16>
    %350 = vector.extract_strided_slice %85 {offsets = [0, 48], sizes = [32, 8], strides = [1, 1]} : vector<32x64xbf16> to vector<32x8xbf16>
    %351 = arith.addf %349, %350 : vector<32x8xbf16>
    %352 = vector.extract_strided_slice %351 {offsets = [0, 0], sizes = [31, 8], strides = [1, 1]} : vector<32x8xbf16> to vector<31x8xbf16>
    %353 = tpu.concatenate %86, %352 in 0 : vector<1x8xbf16>, vector<31x8xbf16> -> vector<32x8xbf16>
    %354 = vector.broadcast %23 : vector<32x1xbf16> to vector<32x8xbf16>
    %355 = arith.mulf %353, %354 : vector<32x8xbf16>
    %356 = vector.extract_strided_slice %351 {offsets = [1, 0], sizes = [31, 8], strides = [1, 1]} : vector<32x8xbf16> to vector<31x8xbf16>
    %357 = tpu.concatenate %356, %86 in 0 : vector<31x8xbf16>, vector<1x8xbf16> -> vector<32x8xbf16>
    %358 = vector.broadcast %28 : vector<32x1xbf16> to vector<32x8xbf16>
    %359 = arith.mulf %357, %358 : vector<32x8xbf16>
    %360 = tpu.concatenate %355, %351, %359 in 1 : vector<32x8xbf16>, vector<32x8xbf16>, vector<32x8xbf16> -> vector<32x24xbf16>
    %c6 = arith.constant 6 : index
    %c0_126 = arith.constant 0 : index
    %c0_127 = arith.constant 0 : index
    %361 = vector.load %arg6[%c6, %c0_126, %c0_127] : memref<7x24x8xbf16, #tpu.memory_space<vmem>>, vector<1x24x8xbf16>
    %362 = vector.shape_cast %361 : vector<1x24x8xbf16> to vector<24x8xbf16>
    %cst_128 = arith.constant dense<0.000000e+00> : vector<32x8xf32>
    %363 = tpu.matmul %360, %362, %cst_128 {dimension_numbers = #tpu.dot_dimension_numbers<[1], [0], [0], [1], [0, 0, 1, 1], [], []>} : vector<32x24xbf16>, vector<24x8xbf16>, vector<32x8xf32> -> vector<32x8xf32>
    %c6_129 = arith.constant 6 : index
    %c0_130 = arith.constant 0 : index
    %c0_131 = arith.constant 0 : index
    %364 = vector.load %arg7[%c6_129, %c0_130, %c0_131] : memref<7x1x8xf32, #tpu.memory_space<vmem>>, vector<1x1x8xf32>
    %365 = vector.shape_cast %364 : vector<1x1x8xf32> to vector<1x8xf32>
    %c6_132 = arith.constant 6 : index
    %c0_133 = arith.constant 0 : index
    %c0_134 = arith.constant 0 : index
    %366 = vector.load %arg8[%c6_132, %c0_133, %c0_134] : memref<7x1x8xf32, #tpu.memory_space<vmem>>, vector<1x1x8xf32>
    %367 = vector.shape_cast %366 : vector<1x1x8xf32> to vector<1x8xf32>
    %cst_135 = arith.constant dense<0.000000e+00> : vector<8xf32>
    %368 = vector.multi_reduction <add>, %363, %cst_135 [0] : vector<32x8xf32> to vector<8xf32>
    %369 = vector.shape_cast %368 : vector<8xf32> to vector<1x8xf32>
    %370 = arith.mulf %363, %363 : vector<32x8xf32>
    %cst_136 = arith.constant dense<0.000000e+00> : vector<8xf32>
    %371 = vector.multi_reduction <add>, %370, %cst_136 [0] : vector<32x8xf32> to vector<8xf32>
    %372 = vector.shape_cast %371 : vector<8xf32> to vector<1x8xf32>
    %cst_137 = arith.constant 3.125000e-02 : f32
    %373 = vector.broadcast %cst_137 : f32 to vector<1x8xf32>
    %374 = arith.mulf %369, %373 : vector<1x8xf32>
    %cst_138 = arith.constant 3.125000e-02 : f32
    %375 = vector.broadcast %cst_138 : f32 to vector<1x8xf32>
    %376 = arith.mulf %372, %375 : vector<1x8xf32>
    %377 = arith.mulf %374, %374 : vector<1x8xf32>
    %378 = arith.subf %376, %377 : vector<1x8xf32>
    %cst_139 = arith.constant 0.000000e+00 : f32
    %379 = vector.broadcast %cst_139 : f32 to vector<1x8xf32>
    %380 = arith.maximumf %378, %379 : vector<1x8xf32>
    %cst_140 = arith.constant 9.99999974E-6 : f32
    %381 = vector.broadcast %cst_140 : f32 to vector<1x8xf32>
    %382 = arith.addf %380, %381 : vector<1x8xf32>
    %383 = math.rsqrt %382 : vector<1x8xf32>
    %384 = arith.mulf %365, %383 : vector<1x8xf32>
    %385 = arith.mulf %374, %384 : vector<1x8xf32>
    %386 = arith.subf %367, %385 : vector<1x8xf32>
    %387 = vector.broadcast %384 : vector<1x8xf32> to vector<32x8xf32>
    %388 = arith.mulf %363, %387 : vector<32x8xf32>
    %389 = vector.broadcast %386 : vector<1x8xf32> to vector<32x8xf32>
    %390 = arith.addf %388, %389 : vector<32x8xf32>
    %cst_141 = arith.constant 0.000000e+00 : f32
    %391 = vector.broadcast %cst_141 : f32 to vector<32x8xf32>
    %392 = arith.maximumf %390, %391 : vector<32x8xf32>
    %393 = arith.truncf %392 : vector<32x8xf32> to vector<32x8xbf16>
    %394 = vector.extract_strided_slice %85 {offsets = [0, 56], sizes = [32, 8], strides = [1, 1]} : vector<32x64xbf16> to vector<32x8xbf16>
    %395 = tpu.concatenate %129, %173, %217, %261, %305, %349, %393, %394 in 1 : vector<32x8xbf16>, vector<32x8xbf16>, vector<32x8xbf16>, vector<32x8xbf16>, vector<32x8xbf16>, vector<32x8xbf16>, vector<32x8xbf16>, vector<32x8xbf16> -> vector<32x64xbf16>
    %c0_142 = arith.constant 0 : index
    %c0_143 = arith.constant 0 : index
    %396 = vector.load %arg9[%c0_142, %c0_143] : memref<64x128xbf16, #tpu.memory_space<vmem>>, vector<64x128xbf16>
    %cst_144 = arith.constant dense<0.000000e+00> : vector<32x128xf32>
    %397 = tpu.matmul %395, %396, %cst_144 {dimension_numbers = #tpu.dot_dimension_numbers<[1], [0], [0], [1], [0, 0, 1, 1], [], []>} : vector<32x64xbf16>, vector<64x128xbf16>, vector<32x128xf32> -> vector<32x128xf32>
    %c0_145 = arith.constant 0 : index
    %c0_146 = arith.constant 0 : index
    %398 = vector.load %arg10[%c0_145, %c0_146] : memref<1x128xf32, #tpu.memory_space<vmem>>, vector<1x128xf32>
    %c0_147 = arith.constant 0 : index
    %c0_148 = arith.constant 0 : index
    %399 = vector.load %arg11[%c0_147, %c0_148] : memref<1x128xf32, #tpu.memory_space<vmem>>, vector<1x128xf32>
    %cst_149 = arith.constant dense<0.000000e+00> : vector<128xf32>
    %400 = vector.multi_reduction <add>, %397, %cst_149 [0] : vector<32x128xf32> to vector<128xf32>
    %401 = vector.shape_cast %400 : vector<128xf32> to vector<1x128xf32>
    %402 = arith.mulf %397, %397 : vector<32x128xf32>
    %cst_150 = arith.constant dense<0.000000e+00> : vector<128xf32>
    %403 = vector.multi_reduction <add>, %402, %cst_150 [0] : vector<32x128xf32> to vector<128xf32>
    %404 = vector.shape_cast %403 : vector<128xf32> to vector<1x128xf32>
    %cst_151 = arith.constant 3.125000e-02 : f32
    %405 = vector.broadcast %cst_151 : f32 to vector<1x128xf32>
    %406 = arith.mulf %401, %405 : vector<1x128xf32>
    %cst_152 = arith.constant 3.125000e-02 : f32
    %407 = vector.broadcast %cst_152 : f32 to vector<1x128xf32>
    %408 = arith.mulf %404, %407 : vector<1x128xf32>
    %409 = arith.mulf %406, %406 : vector<1x128xf32>
    %410 = arith.subf %408, %409 : vector<1x128xf32>
    %cst_153 = arith.constant 0.000000e+00 : f32
    %411 = vector.broadcast %cst_153 : f32 to vector<1x128xf32>
    %412 = arith.maximumf %410, %411 : vector<1x128xf32>
    %cst_154 = arith.constant 9.99999974E-6 : f32
    %413 = vector.broadcast %cst_154 : f32 to vector<1x128xf32>
    %414 = arith.addf %412, %413 : vector<1x128xf32>
    %415 = math.rsqrt %414 : vector<1x128xf32>
    %416 = arith.mulf %398, %415 : vector<1x128xf32>
    %417 = arith.mulf %406, %416 : vector<1x128xf32>
    %418 = arith.subf %399, %417 : vector<1x128xf32>
    %419 = vector.broadcast %416 : vector<1x128xf32> to vector<32x128xf32>
    %420 = arith.mulf %397, %419 : vector<32x128xf32>
    %421 = vector.broadcast %418 : vector<1x128xf32> to vector<32x128xf32>
    %422 = arith.addf %420, %421 : vector<32x128xf32>
    %423 = vector.shape_cast %422 : vector<32x128xf32> to vector<2x16x128xf32>
    %cst_155 = arith.constant dense<0.000000e+00> : vector<2x128xf32>
    %424 = vector.multi_reduction <add>, %423, %cst_155 [1] : vector<2x16x128xf32> to vector<2x128xf32>
    %cst_156 = arith.constant 1.600000e+01 : f32
    %425 = vector.broadcast %cst_156 : f32 to vector<2x128xf32>
    %426 = arith.divf %424, %425 : vector<2x128xf32>
    %427 = arith.truncf %426 : vector<2x128xf32> to vector<2x128xbf16>
    %c0_157 = arith.constant 0 : index
    %c0_158 = arith.constant 0 : index
    %428 = vector.load %arg12[%c0_157, %c0_158] : memref<128x128xbf16, #tpu.memory_space<vmem>>, vector<128x128xbf16>
    %cst_159 = arith.constant dense<0.000000e+00> : vector<2x128xf32>
    %429 = tpu.matmul %427, %428, %cst_159 {dimension_numbers = #tpu.dot_dimension_numbers<[1], [0], [0], [1], [0, 0, 1, 1], [], []>} : vector<2x128xbf16>, vector<128x128xbf16>, vector<2x128xf32> -> vector<2x128xf32>
    %cst_160 = arith.constant 0.000000e+00 : f32
    %430 = vector.broadcast %cst_160 : f32 to vector<2x128xf32>
    %431 = arith.maximumf %429, %430 : vector<2x128xf32>
    %432 = arith.truncf %431 : vector<2x128xf32> to vector<2x128xbf16>
    %c0_161 = arith.constant 0 : index
    %c0_162 = arith.constant 0 : index
    %433 = vector.load %arg13[%c0_161, %c0_162] : memref<128x128xbf16, #tpu.memory_space<vmem>>, vector<128x128xbf16>
    %cst_163 = arith.constant dense<0.000000e+00> : vector<2x128xf32>
    %434 = tpu.matmul %432, %433, %cst_163 {dimension_numbers = #tpu.dot_dimension_numbers<[1], [0], [0], [1], [0, 0, 1, 1], [], []>} : vector<2x128xbf16>, vector<128x128xbf16>, vector<2x128xf32> -> vector<2x128xf32>
    %435 = arith.negf %434 : vector<2x128xf32>
    %436 = math.exp %435 : vector<2x128xf32>
    %cst_164 = arith.constant 1.000000e+00 : f32
    %437 = vector.broadcast %cst_164 : f32 to vector<2x128xf32>
    %438 = arith.addf %437, %436 : vector<2x128xf32>
    %439 = arith.divf %437, %438 : vector<2x128xf32>
    %440 = vector.shape_cast %439 : vector<2x128xf32> to vector<2x1x128xf32>
    %441 = vector.broadcast %440 : vector<2x1x128xf32> to vector<2x16x128xf32>
    %442 = arith.mulf %423, %441 : vector<2x16x128xf32>
    %443 = vector.shape_cast %442 : vector<2x16x128xf32> to vector<32x128xf32>
    %444 = arith.addf %443, %57 : vector<32x128xf32>
    %cst_165 = arith.constant 0.000000e+00 : f32
    %445 = vector.broadcast %cst_165 : f32 to vector<32x128xf32>
    %446 = arith.maximumf %444, %445 : vector<32x128xf32>
    %c0_166 = arith.constant 0 : index
    %c0_167 = arith.constant 0 : index
    %447 = vector.load %arg14[%c0_166, %c0_167] : memref<32x128xf32, #tpu.memory_space<vmem>>, vector<32x128xf32>
    tpu.vector_store %arg14[%c0_166, %c0_167], %446 {strides = array<i32>} : memref<32x128xf32, #tpu.memory_space<vmem>>, vector<32x128xf32>,
    return
  }
}

</mosaic_0001>

<llo_original>
// kernel: tpu_custom_call.1
$region0: #{tpu_custom_call.1}
  #allocation0 [shape = 'u32[]', space=smem, size = 0x4, offset = 0x4, fixed_abs, tag = 'smem constant byte address 0x4 - core index']
  #allocation1 [shape = 'u32[72,128]{1,0:T(1,128)}', space=vmem, size = 0x9000, scoped, tag = 'internal scratch']
  %s0 = inlined_call_operand.vmem [shape: f32[32,64], index: 0, kind: input, shape index: {}]
  %s1 = inlined_call_operand.vmem [shape: bf16[64,192], index: 1, kind: input, shape index: {}]
  %s2 = inlined_call_operand.vmem [shape: f32[1,64], index: 2, kind: input, shape index: {}]
  %s3 = inlined_call_operand.vmem [shape: f32[1,64], index: 3, kind: input, shape index: {}]
  %s4 = inlined_call_operand.vmem [shape: f32[1,128], index: 4, kind: input, shape index: {}]
  %s5 = inlined_call_operand.vmem [shape: f32[1,128], index: 5, kind: input, shape index: {}]
  %s6 = inlined_call_operand.vmem [shape: bf16[7,24,8], index: 6, kind: input, shape index: {}]
  %s7 = inlined_call_operand.vmem [shape: f32[7,1,8], index: 7, kind: input, shape index: {}]
  %s8 = inlined_call_operand.vmem [shape: f32[7,1,8], index: 8, kind: input, shape index: {}]
  %s9 = inlined_call_operand.hbm [shape: bf16[64,128], index: 9, kind: input, shape index: {}]
  %s10 = inlined_call_operand.vmem [shape: f32[1,128], index: 10, kind: input, shape index: {}]
  %s11 = inlined_call_operand.vmem [shape: f32[1,128], index: 11, kind: input, shape index: {}]
  %s12 = inlined_call_operand.hbm [shape: bf16[128,128], index: 12, kind: input, shape index: {}]
  %s13 = inlined_call_operand.hbm [shape: bf16[128,128], index: 13, kind: input, shape index: {}]
  %s14 = inlined_call_operand.hbm [shape: f32[32,128], index: 14, kind: output, shape index: {}]
  %s15 = sld [smem:[#allocation0]]
  $region78: #{tpu_custom_call.1} parent=0
    _
  %s17 = ssub.s32 1, %s15
  %s18 = scalar_select 0, %s17, %s15
  $region1: #{tpu_custom_call.1} parent=0
    #allocation2 [shape = 'u8[16384]{0}', space=vmem, size = 0x4000, scoped, tag = 'input window, operand 9, single buffered']
    #allocation3 [shape = 's32[1]{0}', space=sflag, size = 0x4, scoped, tag = 'scoped memory for tpu_custom_call.1']
    #allocation4 [shape = 's32[1]{0}', space=sflag, size = 0x4, scoped, tag = 'scoped memory for tpu_custom_call.1']
    #allocation5 [shape = 'u8[32768]{0}', space=vmem, size = 0x8000, scoped, tag = 'input window, operand 12, single buffered']
    #allocation6 [shape = 's32[1]{0}', space=sflag, size = 0x4, scoped, tag = 'scoped memory for tpu_custom_call.1']
    #allocation7 [shape = 'u8[32768]{0}', space=vmem, size = 0x8000, scoped, tag = 'input window, operand 13, single buffered']
    #allocation8 [shape = 'u8[16384]{0}', space=vmem, size = 0x4000, scoped, tag = 'output window, operand 0, single buffered']
    %19 = vsyncpa [#allocation3], 0
    %20 = vsyncpa [#allocation6], 0
    %21 = vsyncpa [#allocation4], 0
    // Predicated region
    $region2: #{tpu_custom_call.1} parent=1 // pred_check
      _
    $region3: #{tpu_custom_call.1} parent=1 // pred_check_branch
      %23 = sbr.rel (0) target = $region5
    $region4: #{tpu_custom_call.1} parent=1 // pred_region
      _
    $region5: #{tpu_custom_call.1} parent=1 // pred_fallthru
      _
    // Predicated region
    $region6: #{tpu_custom_call.1} parent=1 // pred_check
      _
    $region7: #{tpu_custom_call.1} parent=1 // pred_check_branch
      %25 = sbr.rel (0) target = $region9
    $region8: #{tpu_custom_call.1} parent=1 // pred_region
      _
    $region9: #{tpu_custom_call.1} parent=1 // pred_fallthru
      _
    // Predicated region
    $region10: #{tpu_custom_call.1} parent=1 // pred_check
      _
    $region11: #{tpu_custom_call.1} parent=1 // pred_check_branch
      %27 = sbr.rel (0) target = $region13
    $region12: #{tpu_custom_call.1} parent=1 // pred_region
      _
    $region13: #{tpu_custom_call.1} parent=1 // pred_fallthru
      _
    // Predicated region
    $region14: #{tpu_custom_call.1} parent=1 // pred_check
      _
    $region15: #{tpu_custom_call.1} parent=1 // pred_check_branch
      %29 = sbr.rel (0) target = $region17
    $region16: #{tpu_custom_call.1} parent=1 // pred_region
      _
    $region17: #{tpu_custom_call.1} parent=1 // pred_fallthru
      _
    // Predicated region
    $region18: #{tpu_custom_call.1} parent=1 // pred_check
      _
    $region19: #{tpu_custom_call.1} parent=1 // pred_check_branch
      %31 = sbr.rel (0) target = $region21
    $region20: #{tpu_custom_call.1} parent=1 // pred_region
      _
    $region21: #{tpu_custom_call.1} parent=1 // pred_fallthru
      _
    // Predicated region
    $region22: #{tpu_custom_call.1} parent=1 // pred_check
      _
    $region23: #{tpu_custom_call.1} parent=1 // pred_check_branch
      %33 = sbr.rel (0) target = $region25
    $region24: #{tpu_custom_call.1} parent=1 // pred_region
      _
    $region25: #{tpu_custom_call.1} parent=1 // pred_fallthru
      _
    // Predicated region
    $region26: #{tpu_custom_call.1} parent=1 // pred_check
      _
    $region27: #{tpu_custom_call.1} parent=1 // pred_check_branch
      %35 = sbr.rel (0) target = $region29
    $region28: #{tpu_custom_call.1} parent=1 // pred_region
      _
    $region29: #{tpu_custom_call.1} parent=1 // pred_fallthru
      _
    // Predicated region
    $region30: #{tpu_custom_call.1} parent=1 // pred_check
      _
    $region31: #{tpu_custom_call.1} parent=1 // pred_check_branch
      %37 = sbr.rel (0) target = $region33
    $region32: #{tpu_custom_call.1} parent=1 // pred_region
      _
    $region33: #{tpu_custom_call.1} parent=1 // pred_fallthru
      _
    // Predicated region
    $region34: #{tpu_custom_call.1} parent=1 // pred_check
      _
    $region35: #{tpu_custom_call.1} parent=1 // pred_check_branch
      %39 = sbr.rel (0) target = $region37
    $region36: #{tpu_custom_call.1} parent=1 // pred_region
      _
    $region37: #{tpu_custom_call.1} parent=1 // pred_fallthru
      _
    // Predicated region
    $region38: #{tpu_custom_call.1} parent=1 // pred_check
      _
    $region39: #{tpu_custom_call.1} parent=1 // pred_check_branch
      %41 = sbr.rel (0) target = $region41
    $region40: #{tpu_custom_call.1} parent=1 // pred_region
      %43 = vsyncadd [#allocation3], 0
      %s44 = sshll.u32 %s9, 4
      %s45 = int_to_ptr.hbm [resolvable:$true] %s44
      %s46 = sshll.u32 [#allocation2], 4
      %s47 = int_to_ptr.vmem [resolvable:$true] %s46
      %52 = dma.hbm_to_vmem [thread:$0]  %s45, 512, %s47, [#allocation3], 64, 64, 4
    $region41: #{tpu_custom_call.1} parent=1 // pred_fallthru
      _
    // Predicated region
    $region42: #{tpu_custom_call.1} parent=1 // pred_check
      _
    $region43: #{tpu_custom_call.1} parent=1 // pred_check_branch
      %54 = sbr.rel (0) target = $region45
    $region44: #{tpu_custom_call.1} parent=1 // pred_region
      _
    $region45: #{tpu_custom_call.1} parent=1 // pred_fallthru
      _
    // Predicated region
    $region46: #{tpu_custom_call.1} parent=1 // pred_check
      _
    $region47: #{tpu_custom_call.1} parent=1 // pred_check_branch
      %56 = sbr.rel (0) target = $region49
    $region48: #{tpu_custom_call.1} parent=1 // pred_region
      _
    $region49: #{tpu_custom_call.1} parent=1 // pred_fallthru
      _
    // Predicated region
    $region50: #{tpu_custom_call.1} parent=1 // pred_check
      _
    $region51: #{tpu_custom_call.1} parent=1 // pred_check_branch
      %58 = sbr.rel (0) target = $region53
    $region52: #{tpu_custom_call.1} parent=1 // pred_region
      %60 = vsyncadd [#allocation6], 0
      %s61 = sshll.u32 %s12, 4
      %s62 = int_to_ptr.hbm [resolvable:$true] %s61
      %s63 = sshll.u32 [#allocation5], 4
      %s64 = int_to_ptr.vmem [resolvable:$true] %s63
      %69 = dma.hbm_to_vmem [thread:$0]  %s62, 1024, %s64, [#allocation6], 64, 64, 4
    $region53: #{tpu_custom_call.1} parent=1 // pred_fallthru
      _
    // Predicated region
    $region54: #{tpu_custom_call.1} parent=1 // pred_check
      _
    $region55: #{tpu_custom_call.1} parent=1 // pred_check_branch
      %71 = sbr.rel (0) target = $region57
    $region56: #{tpu_custom_call.1} parent=1 // pred_region
      %73 = vsyncadd [#allocation6], 0
      %s74 = sshll.u32 %s13, 4
      %s75 = int_to_ptr.hbm [resolvable:$true] %s74
      %s76 = sshll.u32 [#allocation7], 4
      %s77 = int_to_ptr.vmem [resolvable:$true] %s76
      %82 = dma.hbm_to_vmem [thread:$0]  %s75, 1024, %s77, [#allocation6], 64, 64, 4
    $region57: #{tpu_custom_call.1} parent=1 // pred_fallthru
      _
    // Predicated region
    $region58: #{tpu_custom_call.1} parent=1 // pred_check
      _
    $region59: #{tpu_custom_call.1} parent=1 // pred_check_branch
      %84 = sbr.rel (0) target = $region61
    $region60: #{tpu_custom_call.1} parent=1 // pred_region
      %86 = dma.done [#allocation3], 512
    $region61: #{tpu_custom_call.1} parent=1 // pred_fallthru
      _
    // Predicated region
    $region62: #{tpu_custom_call.1} parent=1 // pred_check
      _
    $region63: #{tpu_custom_call.1} parent=1 // pred_check_branch
      %88 = sbr.rel (0) target = $region65
    $region64: #{tpu_custom_call.1} parent=1 // pred_region
      %90 = dma.done [#allocation6], 1024
    $region65: #{tpu_custom_call.1} parent=1 // pred_fallthru
      _
    // Predicated region
    $region66: #{tpu_custom_call.1} parent=1 // pred_check
      _
    $region67: #{tpu_custom_call.1} parent=1 // pred_check_branch
      %92 = sbr.rel (0) target = $region69
    $region68: #{tpu_custom_call.1} parent=1 // pred_region
      %94 = dma.done [#allocation6], 1024
    $region69: #{tpu_custom_call.1} parent=1 // pred_fallthru
      _
    %v96 = vld [vmem:[%s0] sm:$0xff]
    %v97 = vld [vmem:[%s0 + $0x8] sm:$0xff]
    %v98 = vld [vmem:[%s0 + $0x10] sm:$0xff]
    %v99 = vld [vmem:[%s0 + $0x18] sm:$0xff]
    %v100 = vpack.c.bf16 %v97, %v96
    %v101 = vpack.c.bf16 %v99, %v98
    %v102 = vlaneseq
    %v103 = vshrl.u32 %v102, 7
    %v104 = vadd.s32 %v103, 8
    %v105 = vadd.s32 %v103, 16
    %v106 = vadd.s32 %v103, 24
    %vm107 = vcmp.lt.s32.totalorder %v103, 0
    %v108 = vsub.s32 0, %v103
    %v109 = vsel %vm107, %v108, %v103
    %v110 = vshrl.u32 %v109, 4
    %v111 = vand.u32 %v109, 15
    %v112 = vsub.s32 0, %v111
    %v113 = vsel %vm107, %v112, %v111
    %vm114 = vcmp.lt.s32.totalorder %v104, 0
    %v115 = vsub.s32 0, %v104
    %v116 = vsel %vm114, %v115, %v104
    %v117 = vshrl.u32 %v116, 4
    %v118 = vand.u32 %v116, 15
    %v119 = vsub.s32 0, %v118
    %v120 = vsel %vm114, %v119, %v118
    %vm121 = vcmp.lt.s32.totalorder %v105, 0
    %v122 = vsub.s32 0, %v105
    %v123 = vsel %vm121, %v122, %v105
    %v124 = vshrl.u32 %v123, 4
    %v125 = vand.u32 %v123, 15
    %v126 = vsub.s32 0, %v125
    %v127 = vsel %vm121, %v126, %v125
    %vm128 = vcmp.lt.s32.totalorder %v106, 0
    %v129 = vsub.s32 0, %v106
    %v130 = vsel %vm128, %v129, %v106
    %v131 = vshrl.u32 %v130, 4
    %v132 = vand.u32 %v130, 15
    %v133 = vsub.s32 0, %v132
    %v134 = vsel %vm128, %v133, %v132
    %vm135 = vcmp.ne.s32.totalorder %v113, 0
    %vm136 = vcmp.ne.s32.totalorder %v120, 0
    %vm137 = vcmp.ne.s32.totalorder %v127, 0
    %vm138 = vcmp.ne.s32.totalorder %v134, 0
    %vm139 = vcmp.lt.s32.totalorder %v113, 0
    %vm140 = vcmp.lt.s32.totalorder %v120, 0
    %vm141 = vcmp.lt.s32.totalorder %v127, 0
    %vm142 = vcmp.lt.s32.totalorder %v134, 0
    %vm143 = vmand %vm139, %vm135
    %vm144 = vmand %vm140, %vm136
    %vm145 = vmand %vm141, %vm137
    %vm146 = vmand %vm142, %vm138
    %v147 = vadd.s32 %v113, 16
    %v148 = vadd.s32 %v120, 16
    %v149 = vadd.s32 %v127, 16
    %v150 = vadd.s32 %v134, 16
    %v151 = vsel %vm143, %v147, %v113
    %v152 = vsel %vm144, %v148, %v120
    %v153 = vsel %vm145, %v149, %v127
    %v154 = vsel %vm146, %v150, %v134
    %vm155 = vcmp.gt.s32.totalorder %v151, 0
    %vm156 = vcmp.gt.s32.totalorder %v152, 0
    %vm157 = vcmp.gt.s32.totalorder %v153, 0
    %vm158 = vcmp.gt.s32.totalorder %v154, 0
    %v159 = vsel %vm155, 1, 0
    %v160 = vsel %vm156, 1, 0
    %v161 = vsel %vm157, 1, 0
    %v162 = vsel %vm158, 1, 0
    %v163 = vcvt.s32.f32 %v159
    %v164 = vcvt.s32.f32 %v160
    %v165 = vcvt.s32.f32 %v161
    %v166 = vcvt.s32.f32 %v162
    %v167 = vpack.c.bf16 %v163, %v163
    %v168 = vpack.c.bf16 %v164, %v164
    %v169 = vpack.c.bf16 %v165, %v165
    %v170 = vpack.c.bf16 %v166, %v166
    %vm171 = vcmp.lt.s32.totalorder %v151, 15
    %vm172 = vcmp.lt.s32.totalorder %v152, 15
    %vm173 = vcmp.lt.s32.totalorder %v153, 15
    %vm174 = vcmp.lt.s32.totalorder %v154, 15
    %v175 = vsel %vm171, 1, 0
    %v176 = vsel %vm172, 1, 0
    %v177 = vsel %vm173, 1, 0
    %v178 = vsel %vm174, 1, 0
    %v179 = vcvt.s32.f32 %v175
    %v180 = vcvt.s32.f32 %v176
    %v181 = vcvt.s32.f32 %v177
    %v182 = vcvt.s32.f32 %v178
    %v183 = vpack.c.bf16 %v179, %v179
    %v184 = vpack.c.bf16 %v180, %v180
    %v185 = vpack.c.bf16 %v181, %v181
    %v186 = vpack.c.bf16 %v182, %v182
    %v187 = vld [vmem:[%s1] sm:$0xff]
    %v188 = vld [vmem:[%s1 + $0x8] sm:$0xff]
    %v189 = vld [vmem:[%s1 + $0x10] sm:$0xff]
    %v190 = vld [vmem:[%s1 + $0x18] sm:$0xff]
    %v191 = vld [vmem:[%s1 + $0x20] sm:$0xff]
    %v192 = vld [vmem:[%s1 + $0x28] sm:$0xff]
    %v193 = vld [vmem:[%s1 + $0x30] sm:$0xff]
    %v194 = vld [vmem:[%s1 + $0x38] sm:$0xff]
    %v203 = vunpack.c.l.b16 %v187
    %v204 = vunpack.c.h.b16 %v187
    %v205 = vunpack.c.l.b16 %v188
    %v206 = vunpack.c.h.b16 %v188
    %v207 = vunpack.c.l.b16 %v189
    %v208 = vunpack.c.h.b16 %v189
    %v209 = vunpack.c.l.b16 %v190
    %v210 = vunpack.c.h.b16 %v190
    %v211 = vunpack.c.l.b16 %v191
    %v212 = vunpack.c.h.b16 %v191
    %v213 = vunpack.c.l.b16 %v192
    %v214 = vunpack.c.h.b16 %v192
    %v215 = vunpack.c.l.b16 %v193
    %v216 = vunpack.c.h.b16 %v193
    %v217 = vunpack.c.l.b16 %v194
    %v218 = vunpack.c.h.b16 %v194
    %v219 = vpack.c.b16 %v205, %v203
    %v220 = vpack.c.b16 %v206, %v204
    %v221 = vpack.c.b16 %v209, %v207
    %v222 = vpack.c.b16 %v210, %v208
    %v223 = vpack.c.b16 %v213, %v211
    %v224 = vpack.c.b16 %v214, %v212
    %v225 = vpack.c.b16 %v217, %v215
    %v226 = vpack.c.b16 %v218, %v216
    %vm235 = vcmask 523264
    %v237 = vsel %vm235, %v100, 0
    %v240 = vsel %vm235, %v101, 0
    %242 = vmatpush.bf16.msra.mxu0 0
    %243 = vmatpush.bf16.msra.mxu0 0
    %244 = vmatpush.bf16.msra.mxu0 0
    %245 = vmatpush.bf16.msra.mxu0 0
    %246 = vmatpush.bf16.msra.mxu0 %v225
    %247 = vmatpush.bf16.msra.mxu0 %v223
    %248 = vmatpush.bf16.msra.mxu0 %v221
    %249 = vmatpush.bf16.msra.mxu0 %v219
    %250 = vmatmul.bf16.gmra.mxu0 %v237
    %v251 = vpop.f32.mrf.mxu0
    %v252 = vadd.f32 0.0, %v251
    %v253 = vpop.f32.mrf.mxu0
    %v254 = vadd.f32 0.0, %v253
    %255 = vmatmul.bf16.gmra.mxu0 %v240
    %v256 = vpop.f32.mrf.mxu0
    %v257 = vadd.f32 0.0, %v256
    %v258 = vpop.f32.mrf.mxu0
    %v259 = vadd.f32 0.0, %v258
    %260 = vdwg.mxu0
    %261 = vmatpush.bf16.msra.mxu0 0
    %262 = vmatpush.bf16.msra.mxu0 0
    %263 = vmatpush.bf16.msra.mxu0 0
    %264 = vmatpush.bf16.msra.mxu0 0
    %265 = vmatpush.bf16.msra.mxu0 %v226
    %266 = vmatpush.bf16.msra.mxu0 %v224
    %267 = vmatpush.bf16.msra.mxu0 %v222
    %268 = vmatpush.bf16.msra.mxu0 %v220
    %269 = vmatmul.bf16.gmra.mxu0 %v237
    %v270 = vpop.f32.mrf.mxu0
    %v271 = vadd.f32 0.0, %v270
    %v272 = vpop.f32.mrf.mxu0
    %v273 = vadd.f32 0.0, %v272
    %274 = vmatmul.bf16.gmra.mxu0 %v240
    %v275 = vpop.f32.mrf.mxu0
    %v276 = vadd.f32 0.0, %v275
    %v277 = vpop.f32.mrf.mxu0
    %v278 = vadd.f32 0.0, %v277
    %279 = vdwg.mxu0
    %v280 = vld [vmem:[%s4] sm:$0x1]
    %v281 = vld [vmem:[%s5] sm:$0x1]
    %vm282 = vcmask 1048064
    %v283 = vsel %vm282, %v252, 0.0
    %v284 = vsel %vm282, %v254, 0.0
    %v285 = vadd.f32 %v283, %v284
    %v286 = vsel %vm282, %v257, 0.0
    %v287 = vadd.f32 %v285, %v286
    %v288 = vsel %vm282, %v259, 0.0
    %v289 = vadd.f32 %v287, %v288
    %v290 = vrot.slane %v289, 4
    %v291 = vadd.f32 %v289, %v290
    %v292 = vrot.slane %v291, 2
    %v293 = vadd.f32 %v291, %v292
    %v294 = vrot.slane %v293, 1
    %v295 = vadd.f32 %v293, %v294
    %v296 = vsel %vm235, %v271, 0.0
    %v297 = vsel %vm235, %v273, 0.0
    %v298 = vadd.f32 %v296, %v297
    %v299 = vsel %vm235, %v276, 0.0
    %v300 = vadd.f32 %v298, %v299
    %v301 = vsel %vm235, %v278, 0.0
    %v302 = vadd.f32 %v300, %v301
    %v303 = vrot.slane %v302, 4
    %v304 = vadd.f32 %v302, %v303
    %v305 = vrot.slane %v304, 2
    %v306 = vadd.f32 %v304, %v305
    %v307 = vrot.slane %v306, 1
    %v308 = vadd.f32 %v306, %v307
    %v309 = vmul.f32 %v252, %v252
    %v310 = vmul.f32 %v271, %v271
    %v311 = vmul.f32 %v254, %v254
    %v312 = vmul.f32 %v273, %v273
    %v313 = vmul.f32 %v257, %v257
    %v314 = vmul.f32 %v276, %v276
    %v315 = vmul.f32 %v259, %v259
    %v316 = vmul.f32 %v278, %v278
    %v317 = vsel %vm282, %v309, 0.0
    %v318 = vsel %vm282, %v311, 0.0
    %v319 = vadd.f32 %v317, %v318
    %v320 = vsel %vm282, %v313, 0.0
    %v321 = vadd.f32 %v319, %v320
    %v322 = vsel %vm282, %v315, 0.0
    %v323 = vadd.f32 %v321, %v322
    %v324 = vrot.slane %v323, 4
    %v325 = vadd.f32 %v323, %v324
    %v326 = vrot.slane %v325, 2
    %v327 = vadd.f32 %v325, %v326
    %v328 = vrot.slane %v327, 1
    %v329 = vadd.f32 %v327, %v328
    %v330 = vsel %vm235, %v310, 0.0
    %v331 = vsel %vm235, %v312, 0.0
    %v332 = vadd.f32 %v330, %v331
    %v333 = vsel %vm235, %v314, 0.0
    %v334 = vadd.f32 %v332, %v333
    %v335 = vsel %vm235, %v316, 0.0
    %v336 = vadd.f32 %v334, %v335
    %v337 = vrot.slane %v336, 4
    %v338 = vadd.f32 %v336, %v337
    %v339 = vrot.slane %v338, 2
    %v340 = vadd.f32 %v338, %v339
    %v341 = vrot.slane %v340, 1
    %v342 = vadd.f32 %v340, %v341
    %v343 = vmul.f32 %v295, 0.03125
    %v344 = vmul.f32 %v308, 0.03125
    %v345 = vmul.f32 %v329, 0.03125
    %v346 = vmul.f32 %v342, 0.03125
    %v347 = vmul.f32 %v343, %v343
    %v348 = vmul.f32 %v344, %v344
    %v349 = vsub.f32 %v345, %v347
    %v350 = vsub.f32 %v346, %v348
    %v351 = vmax.f32 %v349, 0.0
    %v352 = vmax.f32 %v350, 0.0
    %v353 = vadd.f32 %v351, 1e-05
    %v354 = vadd.f32 %v352, 1e-05
    %v355 = vrsqrt.pop %v353
    %v356 = vmul.f32 %v355, %v353
    %v357 = vmul.f32 %v356, %v355
    %v358 = vmul.f32 0.5, %v357
    %v359 = vsub.f32 1.5, %v358
    %v360 = vmul.f32 %v355, %v359
    %vm361 = vweird.f32 %v353
    %vm362 = vweird.f32 %v355
    %vm363 = vmor %vm361, %vm362
    %v364 = vsel %vm363, %v355, %v360
    %v365 = vrsqrt.pop %v354
    %v366 = vmul.f32 %v365, %v354
    %v367 = vmul.f32 %v366, %v365
    %v368 = vmul.f32 0.5, %v367
    %v369 = vsub.f32 1.5, %v368
    %v370 = vmul.f32 %v365, %v369
    %vm371 = vweird.f32 %v354
    %vm372 = vweird.f32 %v365
    %vm373 = vmor %vm371, %vm372
    %v374 = vsel %vm373, %v365, %v370
    %v377 = vrot.slane %v374, 7
    %vm378 = vcmask 1040384
    %v379 = vsel %vm378, %v364, %v377
    %380 = vrot.lane.b32.xlu0 %v379, 64
    %v381 = vpop.permute.xlu0 %380
    %v382 = vrot.slane %v381, 1
    %v383 = vsel %vm235, %v381, %v382
    %v385 = vmul.f32 %v280, %v383
    %v387 = vperm.slane %v385, 0
    %388 = vrot.lane.b32.xlu0 %v387, 64
    %v389 = vpop.permute.xlu0 %388
    %v391 = vmul.f32 %v343, %v389
    %v392 = vmul.f32 %v344, %v389
    %v395 = vrot.slane %v392, 7
    %v396 = vsel %vm378, %v391, %v395
    %397 = vrot.lane.b32.xlu0 %v396, 64
    %v398 = vpop.permute.xlu0 %397
    %v399 = vrot.slane %v398, 1
    %v400 = vsel %vm235, %v398, %v399
    %v402 = vsub.f32 %v281, %v400
    %v403 = vmul.f32 %v252, %v389
    %v404 = vmul.f32 %v271, %v389
    %v405 = vmul.f32 %v254, %v389
    %v406 = vmul.f32 %v273, %v389
    %v407 = vmul.f32 %v257, %v389
    %v408 = vmul.f32 %v276, %v389
    %v409 = vmul.f32 %v259, %v389
    %v410 = vmul.f32 %v278, %v389
    %v412 = vperm.slane %v402, 0
    %413 = vrot.lane.b32.xlu0 %v412, 64
    %v414 = vpop.permute.xlu0 %413
    %v416 = vadd.f32 %v403, %v414
    %v417 = vadd.f32 %v404, %v414
    %v418 = vadd.f32 %v405, %v414
    %v419 = vadd.f32 %v406, %v414
    %v420 = vadd.f32 %v407, %v414
    %v421 = vadd.f32 %v408, %v414
    %v422 = vadd.f32 %v409, %v414
    %v423 = vadd.f32 %v410, %v414
    %v424 = vld [vmem:[%s2] sm:$0x1]
    %v425 = vld [vmem:[%s3] sm:$0x1]
    %v426 = vsel %vm235, %v252, 0.0
    %v427 = vsel %vm235, %v254, 0.0
    %v428 = vadd.f32 %v426, %v427
    %v429 = vsel %vm235, %v257, 0.0
    %v430 = vadd.f32 %v428, %v429
    %v431 = vsel %vm235, %v259, 0.0
    %v432 = vadd.f32 %v430, %v431
    %v433 = vrot.slane %v432, 4
    %v434 = vadd.f32 %v432, %v433
    %v435 = vrot.slane %v434, 2
    %v436 = vadd.f32 %v434, %v435
    %v437 = vrot.slane %v436, 1
    %v438 = vadd.f32 %v436, %v437
    %v439 = vsel %vm235, %v309, 0.0
    %v440 = vsel %vm235, %v311, 0.0
    %v441 = vadd.f32 %v439, %v440
    %v442 = vsel %vm235, %v313, 0.0
    %v443 = vadd.f32 %v441, %v442
    %v444 = vsel %vm235, %v315, 0.0
    %v445 = vadd.f32 %v443, %v444
    %v446 = vrot.slane %v445, 4
    %v447 = vadd.f32 %v445, %v446
    %v448 = vrot.slane %v447, 2
    %v449 = vadd.f32 %v447, %v448
    %v450 = vrot.slane %v449, 1
    %v451 = vadd.f32 %v449, %v450
    %v452 = vmul.f32 %v438, 0.03125
    %v453 = vmul.f32 %v451, 0.03125
    %v454 = vmul.f32 %v452, %v452
    %v455 = vsub.f32 %v453, %v454
    %v456 = vmax.f32 %v455, 0.0
    %v457 = vadd.f32 %v456, 1e-05
    %v458 = vrsqrt.pop %v457
    %v459 = vmul.f32 %v458, %v457
    %v460 = vmul.f32 %v459, %v458
    %v461 = vmul.f32 0.5, %v460
    %v462 = vsub.f32 1.5, %v461
    %v463 = vmul.f32 %v458, %v462
    %vm464 = vweird.f32 %v457
    %vm465 = vweird.f32 %v458
    %vm466 = vmor %vm464, %vm465
    %v467 = vsel %vm466, %v458, %v463
    %v468 = vmul.f32 %v424, %v467
    %v469 = vmul.f32 %v452, %v468
    %v470 = vsub.f32 %v425, %v469
    %v472 = vperm.slane %v468, 0
    %v474 = vmul.f32 %v252, %v472
    %v475 = vmul.f32 %v254, %v472
    %v476 = vmul.f32 %v257, %v472
    %v477 = vmul.f32 %v259, %v472
    %v479 = vperm.slane %v470, 0
    %v481 = vadd.f32 %v474, %v479
    %v482 = vadd.f32 %v475, %v479
    %v483 = vadd.f32 %v476, %v479
    %v484 = vadd.f32 %v477, %v479
    %v485 = vmax.f32 %v481, 0.0
    %v486 = vmax.f32 %v482, 0.0
    %v487 = vmax.f32 %v483, 0.0
    %v488 = vmax.f32 %v484, 0.0
    %v489 = vpack.c.bf16 %v485, %v485
    %v490 = vpack.c.bf16 %v486, %v486
    %v491 = vpack.c.bf16 %v487, %v487
    %v492 = vpack.c.bf16 %v488, %v488
    %v497 = vunpack.c.l.b16 %v489
    %v498 = vunpack.c.l.b16 %v490
    %v499 = vunpack.c.l.b16 %v491
    %v500 = vunpack.c.l.b16 %v492
    %v501 = vpack.c.b16 %v498, %v497
    %v502 = vpack.c.b16 %v500, %v499
    %vm503 = vsmask.f32 256
    %v505 = vshrl.u32 %v501, 16
    %v507 = vrot.slane %v505, 7
    %v508 = vshll.u32 %v501, 16
    %v510 = vor.u32 %v507, %v508
    %v512 = vshrl.u32 %v502, 16
    %v514 = vrot.slane %v512, 7
    %v515 = vshll.u32 %v502, 16
    %v517 = vor.u32 %v514, %v515
    %v518 = vsel %vm503, %v507, %v517
    %vm521 = vcmask 1040384
    %vm522 = vmand %vm521, %vm503
    %v523 = vsel %vm522, 0, %v510
    %v524 = vunpack.c.l.bf16 %v523
    %v525 = vunpack.c.h.bf16 %v523
    %v526 = vunpack.c.l.bf16 %v518
    %v527 = vunpack.c.h.bf16 %v518
    %v528 = vunpack.c.l.bf16 %v167
    %v529 = vunpack.c.l.bf16 %v168
    %v530 = vunpack.c.l.bf16 %v169
    %v531 = vunpack.c.l.bf16 %v170
    %v532 = vmul.f32 %v524, %v528
    %v533 = vmul.f32 %v525, %v529
    %v534 = vmul.f32 %v526, %v530
    %v535 = vmul.f32 %v527, %v531
    %v536 = vpack.c.bf16 %v532, %v532
    %v537 = vpack.c.bf16 %v533, %v533
    %v538 = vpack.c.bf16 %v534, %v534
    %v539 = vpack.c.bf16 %v535, %v535
    %vm540 = vsmask.f32 7424
    %v541 = vrot.slane %v508, 1
    %v542 = vor.u32 %v505, %v541
    %v543 = vrot.slane %v515, 1
    %v544 = vsel %vm540, %v542, %v543
    %v545 = vor.u32 %v512, %v543
    %vm548 = vcmask 1047552
    %vm549 = vmand %vm548, %vm540
    %v550 = vsel %vm549, %v545, 0
    %v551 = vunpack.c.l.bf16 %v544
    %v552 = vunpack.c.h.bf16 %v544
    %v553 = vunpack.c.l.bf16 %v550
    %v554 = vunpack.c.h.bf16 %v550
    %v555 = vunpack.c.l.bf16 %v183
    %v556 = vunpack.c.l.bf16 %v184
    %v557 = vunpack.c.l.bf16 %v185
    %v558 = vunpack.c.l.bf16 %v186
    %v559 = vmul.f32 %v551, %v555
    %v560 = vmul.f32 %v552, %v556
    %v561 = vmul.f32 %v553, %v557
    %v562 = vmul.f32 %v554, %v558
    %v563 = vpack.c.bf16 %v559, %v559
    %v564 = vpack.c.bf16 %v560, %v560
    %v565 = vpack.c.bf16 %v561, %v561
    %v566 = vpack.c.bf16 %v562, %v562
    %v571 = vunpack.c.l.b16 %v536
    %v572 = vunpack.c.l.b16 %v537
    %v573 = vunpack.c.l.b16 %v538
    %v574 = vunpack.c.l.b16 %v539
    %v575 = vpack.c.b16 %v572, %v571
    %v576 = vpack.c.b16 %v574, %v573
    %577 = vrot.lane.b32.xlu0 %v501, 8
    %v578 = vpop.permute.xlu0 %577
    %579 = vrot.lane.b32.xlu0 %v502, 8
    %v580 = vpop.permute.xlu0 %579
    %v585 = vunpack.c.l.b16 %v563
    %v586 = vunpack.c.l.b16 %v564
    %v587 = vunpack.c.l.b16 %v565
    %v588 = vunpack.c.l.b16 %v566
    %v589 = vpack.c.b16 %v586, %v585
    %v590 = vpack.c.b16 %v588, %v587
    %591 = vrot.lane.b32.xlu0 %v589, 16
    %v592 = vpop.permute.xlu0 %591
    %593 = vrot.lane.b32.xlu0 %v590, 16
    %v594 = vpop.permute.xlu0 %593
    %vm595 = vcmask 64512
    %v598 = vsel %vm595, %v575, %v578
    %v601 = vsel %vm595, %v576, %v580
    %vm602 = vcmask 130048
    %v604 = vsel %vm602, %v598, %v592
    %v606 = vsel %vm602, %v601, %v594
    %v607 = vld [vmem:[%s6] sm:$0xf]
    %v608 = vld [vmem:[%s6 + $0x4] sm:$0xf]
    %v609 = vld [vmem:[%s6 + $0x8] sm:$0xf]
    %v613 = vunpack.c.l.b16 %v607
    %v614 = vunpack.c.l.b16 %v608
    %v615 = vunpack.c.l.b16 %v609
    %v616 = vpack.c.b16 %v614, %v613
    %v617 = vpack.c.b16 %v615, %v615
    %vm619 = vcmask 195584
    %v620 = vsel %vm619, %v604, 0
    %v622 = vsel %vm619, %v606, 0
    %vm624 = vcmask 1043456
    %v626 = vsel %vm624, %v617, 0
    %628 = vmatpush.bf16.msra.mxu0 0
    %629 = vmatpush.bf16.msra.mxu0 0
    %630 = vmatpush.bf16.msra.mxu0 0
    %631 = vmatpush.bf16.msra.mxu0 0
    %632 = vmatpush.bf16.msra.mxu0 0
    %633 = vmatpush.bf16.msra.mxu0 0
    %634 = vmatpush.bf16.msra.mxu0 %v626
    %635 = vmatpush.bf16.msra.mxu0 %v616
    %636 = vmatmul.bf16.gmra.mxu0 %v620
    %v637 = vpop.f32.mrf.mxu0
    %v638 = vadd.f32 0.0, %v637
    %v639 = vpop.f32.mrf.mxu0
    %v640 = vadd.f32 0.0, %v639
    %641 = vmatmul.bf16.gmra.mxu0 %v622
    %v642 = vpop.f32.mrf.mxu0
    %v643 = vadd.f32 0.0, %v642
    %v644 = vpop.f32.mrf.mxu0
    %v645 = vadd.f32 0.0, %v644
    %646 = vdwg.mxu0
    %v647 = vld [vmem:[%s7] sm:$0x1]
    %v648 = vld [vmem:[%s8] sm:$0x1]
    %v649 = vsel %vm595, %v638, 0.0
    %v650 = vsel %vm595, %v640, 0.0
    %v651 = vadd.f32 %v649, %v650
    %v652 = vsel %vm595, %v643, 0.0
    %v653 = vadd.f32 %v651, %v652
    %v654 = vsel %vm595, %v645, 0.0
    %v655 = vadd.f32 %v653, %v654
    %v656 = vrot.slane %v655, 4
    %v657 = vadd.f32 %v655, %v656
    %v658 = vrot.slane %v657, 2
    %v659 = vadd.f32 %v657, %v658
    %v660 = vrot.slane %v659, 1
    %v661 = vadd.f32 %v659, %v660
    %v662 = vmul.f32 %v638, %v638
    %v663 = vmul.f32 %v640, %v640
    %v664 = vmul.f32 %v643, %v643
    %v665 = vmul.f32 %v645, %v645
    %v666 = vsel %vm595, %v662, 0.0
    %v667 = vsel %vm595, %v663, 0.0
    %v668 = vadd.f32 %v666, %v667
    %v669 = vsel %vm595, %v664, 0.0
    %v670 = vadd.f32 %v668, %v669
    %v671 = vsel %vm595, %v665, 0.0
    %v672 = vadd.f32 %v670, %v671
    %v673 = vrot.slane %v672, 4
    %v674 = vadd.f32 %v672, %v673
    %v675 = vrot.slane %v674, 2
    %v676 = vadd.f32 %v674, %v675
    %v677 = vrot.slane %v676, 1
    %v678 = vadd.f32 %v676, %v677
    %v679 = vmul.f32 %v661, 0.03125
    %v680 = vmul.f32 %v678, 0.03125
    %v681 = vmul.f32 %v679, %v679
    %v682 = vsub.f32 %v680, %v681
    %v683 = vmax.f32 %v682, 0.0
    %v684 = vadd.f32 %v683, 1e-05
    %v685 = vrsqrt.pop %v684
    %v686 = vmul.f32 %v685, %v684
    %v687 = vmul.f32 %v686, %v685
    %v688 = vmul.f32 0.5, %v687
    %v689 = vsub.f32 1.5, %v688
    %v690 = vmul.f32 %v685, %v689
    %vm691 = vweird.f32 %v684
    %vm692 = vweird.f32 %v685
    %vm693 = vmor %vm691, %vm692
    %v694 = vsel %vm693, %v685, %v690
    %v695 = vmul.f32 %v647, %v694
    %v696 = vmul.f32 %v679, %v695
    %v697 = vsub.f32 %v648, %v696
    %v699 = vperm.slane %v695, 0
    %v701 = vmul.f32 %v638, %v699
    %v702 = vmul.f32 %v640, %v699
    %v703 = vmul.f32 %v643, %v699
    %v704 = vmul.f32 %v645, %v699
    %v706 = vperm.slane %v697, 0
    %v708 = vadd.f32 %v701, %v706
    %v709 = vadd.f32 %v702, %v706
    %v710 = vadd.f32 %v703, %v706
    %v711 = vadd.f32 %v704, %v706
    %v712 = vmax.f32 %v708, 0.0
    %v713 = vmax.f32 %v709, 0.0
    %v714 = vmax.f32 %v710, 0.0
    %v715 = vmax.f32 %v711, 0.0
    %v716 = vpack.c.bf16 %v712, %v712
    %v717 = vpack.c.bf16 %v713, %v713
    %v718 = vpack.c.bf16 %v714, %v714
    %v719 = vpack.c.bf16 %v715, %v715
    %v720 = vunpack.c.l.bf16 %v716
    %v721 = vunpack.c.l.bf16 %v717
    %v722 = vunpack.c.l.bf16 %v718
    %v723 = vunpack.c.l.bf16 %v719
    %v724 = vunpack.c.l.bf16 %v489
    %v725 = vunpack.c.l.bf16 %v490
    %v726 = vunpack.c.l.bf16 %v491
    %v727 = vunpack.c.l.bf16 %v492
    %732 = vrot.lane.b32.xlu0 %v724, 120
    %v733 = vpop.permute.xlu0 %732
    %734 = vrot.lane.b32.xlu0 %v725, 120
    %v735 = vpop.permute.xlu0 %734
    %736 = vrot.lane.b32.xlu0 %v726, 120
    %v737 = vpop.permute.xlu0 %736
    %738 = vrot.lane.b32.xlu0 %v727, 120
    %v739 = vpop.permute.xlu0 %738
    %v744 = vadd.f32 %v720, %v733
    %v745 = vadd.f32 %v721, %v735
    %v746 = vadd.f32 %v722, %v737
    %v747 = vadd.f32 %v723, %v739
    %v748 = vpack.c.bf16 %v744, %v744
    %v749 = vpack.c.bf16 %v745, %v745
    %v750 = vpack.c.bf16 %v746, %v746
    %v751 = vpack.c.bf16 %v747, %v747
    %v756 = vunpack.c.l.b16 %v748
    %v757 = vunpack.c.l.b16 %v749
    %v758 = vunpack.c.l.b16 %v750
    %v759 = vunpack.c.l.b16 %v751
    %v760 = vpack.c.b16 %v757, %v756
    %v761 = vpack.c.b16 %v759, %v758
    %v763 = vshrl.u32 %v760, 16
    %v765 = vrot.slane %v763, 7
    %v766 = vshll.u32 %v760, 16
    %v768 = vor.u32 %v765, %v766
    %v770 = vshrl.u32 %v761, 16
    %v772 = vrot.slane %v770, 7
    %v773 = vshll.u32 %v761, 16
    %v775 = vor.u32 %v772, %v773
    %v776 = vsel %vm503, %v765, %v775
    %v779 = vsel %vm522, 0, %v768
    %v780 = vunpack.c.l.bf16 %v779
    %v781 = vunpack.c.h.bf16 %v779
    %v782 = vunpack.c.l.bf16 %v776
    %v783 = vunpack.c.h.bf16 %v776
    %v784 = vmul.f32 %v780, %v528
    %v785 = vmul.f32 %v781, %v529
    %v786 = vmul.f32 %v782, %v530
    %v787 = vmul.f32 %v783, %v531
    %v788 = vpack.c.bf16 %v784, %v784
    %v789 = vpack.c.bf16 %v785, %v785
    %v790 = vpack.c.bf16 %v786, %v786
    %v791 = vpack.c.bf16 %v787, %v787
    %v792 = vrot.slane %v766, 1
    %v793 = vor.u32 %v763, %v792
    %v794 = vrot.slane %v773, 1
    %v795 = vsel %vm540, %v793, %v794
    %v796 = vor.u32 %v770, %v794
    %v799 = vsel %vm549, %v796, 0
    %v800 = vunpack.c.l.bf16 %v795
    %v801 = vunpack.c.h.bf16 %v795
    %v802 = vunpack.c.l.bf16 %v799
    %v803 = vunpack.c.h.bf16 %v799
    %v804 = vmul.f32 %v800, %v555
    %v805 = vmul.f32 %v801, %v556
    %v806 = vmul.f32 %v802, %v557
    %v807 = vmul.f32 %v803, %v558
    %v808 = vpack.c.bf16 %v804, %v804
    %v809 = vpack.c.bf16 %v805, %v805
    %v810 = vpack.c.bf16 %v806, %v806
    %v811 = vpack.c.bf16 %v807, %v807
    %v816 = vunpack.c.l.b16 %v788
    %v817 = vunpack.c.l.b16 %v789
    %v818 = vunpack.c.l.b16 %v790
    %v819 = vunpack.c.l.b16 %v791
    %v820 = vpack.c.b16 %v817, %v816
    %v821 = vpack.c.b16 %v819, %v818
    %822 = vrot.lane.b32.xlu0 %v760, 8
    %v823 = vpop.permute.xlu0 %822
    %824 = vrot.lane.b32.xlu0 %v761, 8
    %v825 = vpop.permute.xlu0 %824
    %v830 = vunpack.c.l.b16 %v808
    %v831 = vunpack.c.l.b16 %v809
    %v832 = vunpack.c.l.b16 %v810
    %v833 = vunpack.c.l.b16 %v811
    %v834 = vpack.c.b16 %v831, %v830
    %v835 = vpack.c.b16 %v833, %v832
    %836 = vrot.lane.b32.xlu0 %v834, 16
    %v837 = vpop.permute.xlu0 %836
    %838 = vrot.lane.b32.xlu0 %v835, 16
    %v839 = vpop.permute.xlu0 %838
    %v842 = vsel %vm595, %v820, %v823
    %v845 = vsel %vm595, %v821, %v825
    %v847 = vsel %vm602, %v842, %v837
    %v849 = vsel %vm602, %v845, %v839
    %s850 = scalar_lea.vmem %s6, 12
    %v851 = vld [vmem:[%s850] sm:$0xf]
    %v852 = vld [vmem:[%s850 + $0x4] sm:$0xf]
    %v853 = vld [vmem:[%s850 + $0x8] sm:$0xf]
    %v857 = vunpack.c.l.b16 %v851
    %v858 = vunpack.c.l.b16 %v852
    %v859 = vunpack.c.l.b16 %v853
    %v860 = vpack.c.b16 %v858, %v857
    %v861 = vpack.c.b16 %v859, %v859
    %v863 = vsel %vm619, %v847, 0
    %v865 = vsel %vm619, %v849, 0
    %v868 = vsel %vm624, %v861, 0
    %870 = vmatpush.bf16.msra.mxu0 0
    %871 = vmatpush.bf16.msra.mxu0 0
    %872 = vmatpush.bf16.msra.mxu0 0
    %873 = vmatpush.bf16.msra.mxu0 0
    %874 = vmatpush.bf16.msra.mxu0 0
    %875 = vmatpush.bf16.msra.mxu0 0
    %876 = vmatpush.bf16.msra.mxu0 %v868
    %877 = vmatpush.bf16.msra.mxu0 %v860
    %878 = vmatmul.bf16.gmra.mxu0 %v863
    %v879 = vpop.f32.mrf.mxu0
    %v880 = vadd.f32 0.0, %v879
    %v881 = vpop.f32.mrf.mxu0
    %v882 = vadd.f32 0.0, %v881
    %883 = vmatmul.bf16.gmra.mxu0 %v865
    %v884 = vpop.f32.mrf.mxu0
    %v885 = vadd.f32 0.0, %v884
    %v886 = vpop.f32.mrf.mxu0
    %v887 = vadd.f32 0.0, %v886
    %888 = vdwg.mxu0
    %s889 = scalar_lea.vmem %s7, 1
    %v890 = vld [vmem:[%s889] sm:$0x1]
    %s891 = scalar_lea.vmem %s8, 1
    %v892 = vld [vmem:[%s891] sm:$0x1]
    %v893 = vsel %vm595, %v880, 0.0
    %v894 = vsel %vm595, %v882, 0.0
    %v895 = vadd.f32 %v893, %v894
    %v896 = vsel %vm595, %v885, 0.0
    %v897 = vadd.f32 %v895, %v896
    %v898 = vsel %vm595, %v887, 0.0
    %v899 = vadd.f32 %v897, %v898
    %v900 = vrot.slane %v899, 4
    %v901 = vadd.f32 %v899, %v900
    %v902 = vrot.slane %v901, 2
    %v903 = vadd.f32 %v901, %v902
    %v904 = vrot.slane %v903, 1
    %v905 = vadd.f32 %v903, %v904
    %v906 = vmul.f32 %v880, %v880
    %v907 = vmul.f32 %v882, %v882
    %v908 = vmul.f32 %v885, %v885
    %v909 = vmul.f32 %v887, %v887
    %v910 = vsel %vm595, %v906, 0.0
    %v911 = vsel %vm595, %v907, 0.0
    %v912 = vadd.f32 %v910, %v911
    %v913 = vsel %vm595, %v908, 0.0
    %v914 = vadd.f32 %v912, %v913
    %v915 = vsel %vm595, %v909, 0.0
    %v916 = vadd.f32 %v914, %v915
    %v917 = vrot.slane %v916, 4
    %v918 = vadd.f32 %v916, %v917
    %v919 = vrot.slane %v918, 2
    %v920 = vadd.f32 %v918, %v919
    %v921 = vrot.slane %v920, 1
    %v922 = vadd.f32 %v920, %v921
    %v923 = vmul.f32 %v905, 0.03125
    %v924 = vmul.f32 %v922, 0.03125
    %v925 = vmul.f32 %v923, %v923
    %v926 = vsub.f32 %v924, %v925
    %v927 = vmax.f32 %v926, 0.0
    %v928 = vadd.f32 %v927, 1e-05
    %v929 = vrsqrt.pop %v928
    %v930 = vmul.f32 %v929, %v928
    %v931 = vmul.f32 %v930, %v929
    %v932 = vmul.f32 0.5, %v931
    %v933 = vsub.f32 1.5, %v932
    %v934 = vmul.f32 %v929, %v933
    %vm935 = vweird.f32 %v928
    %vm936 = vweird.f32 %v929
    %vm937 = vmor %vm935, %vm936
    %v938 = vsel %vm937, %v929, %v934
    %v939 = vmul.f32 %v890, %v938
    %v940 = vmul.f32 %v923, %v939
    %v941 = vsub.f32 %v892, %v940
    %v943 = vperm.slane %v939, 0
    %v945 = vmul.f32 %v880, %v943
    %v946 = vmul.f32 %v882, %v943
    %v947 = vmul.f32 %v885, %v943
    %v948 = vmul.f32 %v887, %v943
    %v950 = vperm.slane %v941, 0
    %v952 = vadd.f32 %v945, %v950
    %v953 = vadd.f32 %v946, %v950
    %v954 = vadd.f32 %v947, %v950
    %v955 = vadd.f32 %v948, %v950
    %v956 = vmax.f32 %v952, 0.0
    %v957 = vmax.f32 %v953, 0.0
    %v958 = vmax.f32 %v954, 0.0
    %v959 = vmax.f32 %v955, 0.0
    %v960 = vpack.c.bf16 %v956, %v956
    %v961 = vpack.c.bf16 %v957, %v957
    %v962 = vpack.c.bf16 %v958, %v958
    %v963 = vpack.c.bf16 %v959, %v959
    %v964 = vunpack.c.l.bf16 %v960
    %v965 = vunpack.c.l.bf16 %v961
    %v966 = vunpack.c.l.bf16 %v962
    %v967 = vunpack.c.l.bf16 %v963
    %968 = vrot.lane.b32.xlu0 %v724, 112
    %v969 = vpop.permute.xlu0 %968
    %970 = vrot.lane.b32.xlu0 %v725, 112
    %v971 = vpop.permute.xlu0 %970
    %972 = vrot.lane.b32.xlu0 %v726, 112
    %v973 = vpop.permute.xlu0 %972
    %974 = vrot.lane.b32.xlu0 %v727, 112
    %v975 = vpop.permute.xlu0 %974
    %v980 = vadd.f32 %v964, %v969
    %v981 = vadd.f32 %v965, %v971
    %v982 = vadd.f32 %v966, %v973
    %v983 = vadd.f32 %v967, %v975
    %v984 = vpack.c.bf16 %v980, %v980
    %v985 = vpack.c.bf16 %v981, %v981
    %v986 = vpack.c.bf16 %v982, %v982
    %v987 = vpack.c.bf16 %v983, %v983
    %v992 = vunpack.c.l.b16 %v984
    %v993 = vunpack.c.l.b16 %v985
    %v994 = vunpack.c.l.b16 %v986
    %v995 = vunpack.c.l.b16 %v987
    %v996 = vpack.c.b16 %v993, %v992
    %v997 = vpack.c.b16 %v995, %v994
    %v999 = vshrl.u32 %v996, 16
    %v1001 = vrot.slane %v999, 7
    %v1002 = vshll.u32 %v996, 16
    %v1004 = vor.u32 %v1001, %v1002
    %v1006 = vshrl.u32 %v997, 16
    %v1008 = vrot.slane %v1006, 7
    %v1009 = vshll.u32 %v997, 16
    %v1011 = vor.u32 %v1008, %v1009
    %v1012 = vsel %vm503, %v1001, %v1011
    %v1015 = vsel %vm522, 0, %v1004
    %v1016 = vunpack.c.l.bf16 %v1015
    %v1017 = vunpack.c.h.bf16 %v1015
    %v1018 = vunpack.c.l.bf16 %v1012
    %v1019 = vunpack.c.h.bf16 %v1012
    %v1020 = vmul.f32 %v1016, %v528
    %v1021 = vmul.f32 %v1017, %v529
    %v1022 = vmul.f32 %v1018, %v530
    %v1023 = vmul.f32 %v1019, %v531
    %v1024 = vpack.c.bf16 %v1020, %v1020
    %v1025 = vpack.c.bf16 %v1021, %v1021
    %v1026 = vpack.c.bf16 %v1022, %v1022
    %v1027 = vpack.c.bf16 %v1023, %v1023
    %v1028 = vrot.slane %v1002, 1
    %v1029 = vor.u32 %v999, %v1028
    %v1030 = vrot.slane %v1009, 1
    %v1031 = vsel %vm540, %v1029, %v1030
    %v1032 = vor.u32 %v1006, %v1030
    %v1035 = vsel %vm549, %v1032, 0
    %v1036 = vunpack.c.l.bf16 %v1031
    %v1037 = vunpack.c.h.bf16 %v1031
    %v1038 = vunpack.c.l.bf16 %v1035
    %v1039 = vunpack.c.h.bf16 %v1035
    %v1040 = vmul.f32 %v1036, %v555
    %v1041 = vmul.f32 %v1037, %v556
    %v1042 = vmul.f32 %v1038, %v557
    %v1043 = vmul.f32 %v1039, %v558
    %v1044 = vpack.c.bf16 %v1040, %v1040
    %v1045 = vpack.c.bf16 %v1041, %v1041
    %v1046 = vpack.c.bf16 %v1042, %v1042
    %v1047 = vpack.c.bf16 %v1043, %v1043
    %v1052 = vunpack.c.l.b16 %v1024
    %v1053 = vunpack.c.l.b16 %v1025
    %v1054 = vunpack.c.l.b16 %v1026
    %v1055 = vunpack.c.l.b16 %v1027
    %v1056 = vpack.c.b16 %v1053, %v1052
    %v1057 = vpack.c.b16 %v1055, %v1054
    %1058 = vrot.lane.b32.xlu0 %v996, 8
    %v1059 = vpop.permute.xlu0 %1058
    %1060 = vrot.lane.b32.xlu0 %v997, 8
    %v1061 = vpop.permute.xlu0 %1060
    %v1066 = vunpack.c.l.b16 %v1044
    %v1067 = vunpack.c.l.b16 %v1045
    %v1068 = vunpack.c.l.b16 %v1046
    %v1069 = vunpack.c.l.b16 %v1047
    %v1070 = vpack.c.b16 %v1067, %v1066
    %v1071 = vpack.c.b16 %v1069, %v1068
    %1072 = vrot.lane.b32.xlu0 %v1070, 16
    %v1073 = vpop.permute.xlu0 %1072
    %1074 = vrot.lane.b32.xlu0 %v1071, 16
    %v1075 = vpop.permute.xlu0 %1074
    %v1078 = vsel %vm595, %v1056, %v1059
    %v1081 = vsel %vm595, %v1057, %v1061
    %v1083 = vsel %vm602, %v1078, %v1073
    %v1085 = vsel %vm602, %v1081, %v1075
    %s1086 = scalar_lea.vmem %s6, 24
    %v1087 = vld [vmem:[%s1086] sm:$0xf]
    %v1088 = vld [vmem:[%s1086 + $0x4] sm:$0xf]
    %v1089 = vld [vmem:[%s1086 + $0x8] sm:$0xf]
    %v1093 = vunpack.c.l.b16 %v1087
    %v1094 = vunpack.c.l.b16 %v1088
    %v1095 = vunpack.c.l.b16 %v1089
    %v1096 = vpack.c.b16 %v1094, %v1093
    %v1097 = vpack.c.b16 %v1095, %v1095
    %v1099 = vsel %vm619, %v1083, 0
    %v1101 = vsel %vm619, %v1085, 0
    %v1104 = vsel %vm624, %v1097, 0
    %1106 = vmatpush.bf16.msra.mxu0 0
    %1107 = vmatpush.bf16.msra.mxu0 0
    %1108 = vmatpush.bf16.msra.mxu0 0
    %1109 = vmatpush.bf16.msra.mxu0 0
    %1110 = vmatpush.bf16.msra.mxu0 0
    %1111 = vmatpush.bf16.msra.mxu0 0
    %1112 = vmatpush.bf16.msra.mxu0 %v1104
    %1113 = vmatpush.bf16.msra.mxu0 %v1096
    %1114 = vmatmul.bf16.gmra.mxu0 %v1099
    %v1115 = vpop.f32.mrf.mxu0
    %v1116 = vadd.f32 0.0, %v1115
    %v1117 = vpop.f32.mrf.mxu0
    %v1118 = vadd.f32 0.0, %v1117
    %1119 = vmatmul.bf16.gmra.mxu0 %v1101
    %v1120 = vpop.f32.mrf.mxu0
    %v1121 = vadd.f32 0.0, %v1120
    %v1122 = vpop.f32.mrf.mxu0
    %v1123 = vadd.f32 0.0, %v1122
    %1124 = vdwg.mxu0
    %s1125 = scalar_lea.vmem %s7, 2
    %v1126 = vld [vmem:[%s1125] sm:$0x1]
    %s1127 = scalar_lea.vmem %s8, 2
    %v1128 = vld [vmem:[%s1127] sm:$0x1]
    %v1129 = vsel %vm595, %v1116, 0.0
    %v1130 = vsel %vm595, %v1118, 0.0
    %v1131 = vadd.f32 %v1129, %v1130
    %v1132 = vsel %vm595, %v1121, 0.0
    %v1133 = vadd.f32 %v1131, %v1132
    %v1134 = vsel %vm595, %v1123, 0.0
    %v1135 = vadd.f32 %v1133, %v1134
    %v1136 = vrot.slane %v1135, 4
    %v1137 = vadd.f32 %v1135, %v1136
    %v1138 = vrot.slane %v1137, 2
    %v1139 = vadd.f32 %v1137, %v1138
    %v1140 = vrot.slane %v1139, 1
    %v1141 = vadd.f32 %v1139, %v1140
    %v1142 = vmul.f32 %v1116, %v1116
    %v1143 = vmul.f32 %v1118, %v1118
    %v1144 = vmul.f32 %v1121, %v1121
    %v1145 = vmul.f32 %v1123, %v1123
    %v1146 = vsel %vm595, %v1142, 0.0
    %v1147 = vsel %vm595, %v1143, 0.0
    %v1148 = vadd.f32 %v1146, %v1147
    %v1149 = vsel %vm595, %v1144, 0.0
    %v1150 = vadd.f32 %v1148, %v1149
    %v1151 = vsel %vm595, %v1145, 0.0
    %v1152 = vadd.f32 %v1150, %v1151
    %v1153 = vrot.slane %v1152, 4
    %v1154 = vadd.f32 %v1152, %v1153
    %v1155 = vrot.slane %v1154, 2
    %v1156 = vadd.f32 %v1154, %v1155
    %v1157 = vrot.slane %v1156, 1
    %v1158 = vadd.f32 %v1156, %v1157
    %v1159 = vmul.f32 %v1141, 0.03125
    %v1160 = vmul.f32 %v1158, 0.03125
    %v1161 = vmul.f32 %v1159, %v1159
    %v1162 = vsub.f32 %v1160, %v1161
    %v1163 = vmax.f32 %v1162, 0.0
    %v1164 = vadd.f32 %v1163, 1e-05
    %v1165 = vrsqrt.pop %v1164
    %v1166 = vmul.f32 %v1165, %v1164
    %v1167 = vmul.f32 %v1166, %v1165
    %v1168 = vmul.f32 0.5, %v1167
    %v1169 = vsub.f32 1.5, %v1168
    %v1170 = vmul.f32 %v1165, %v1169
    %vm1171 = vweird.f32 %v1164
    %vm1172 = vweird.f32 %v1165
    %vm1173 = vmor %vm1171, %vm1172
    %v1174 = vsel %vm1173, %v1165, %v1170
    %v1175 = vmul.f32 %v1126, %v1174
    %v1176 = vmul.f32 %v1159, %v1175
    %v1177 = vsub.f32 %v1128, %v1176
    %v1179 = vperm.slane %v1175, 0
    %v1181 = vmul.f32 %v1116, %v1179
    %v1182 = vmul.f32 %v1118, %v1179
    %v1183 = vmul.f32 %v1121, %v1179
    %v1184 = vmul.f32 %v1123, %v1179
    %v1186 = vperm.slane %v1177, 0
    %v1188 = vadd.f32 %v1181, %v1186
    %v1189 = vadd.f32 %v1182, %v1186
    %v1190 = vadd.f32 %v1183, %v1186
    %v1191 = vadd.f32 %v1184, %v1186
    %v1192 = vmax.f32 %v1188, 0.0
    %v1193 = vmax.f32 %v1189, 0.0
    %v1194 = vmax.f32 %v1190, 0.0
    %v1195 = vmax.f32 %v1191, 0.0
    %v1196 = vpack.c.bf16 %v1192, %v1192
    %v1197 = vpack.c.bf16 %v1193, %v1193
    %v1198 = vpack.c.bf16 %v1194, %v1194
    %v1199 = vpack.c.bf16 %v1195, %v1195
    %v1200 = vunpack.c.l.bf16 %v1196
    %v1201 = vunpack.c.l.bf16 %v1197
    %v1202 = vunpack.c.l.bf16 %v1198
    %v1203 = vunpack.c.l.bf16 %v1199
    %1204 = vrot.lane.b32.xlu0 %v724, 104
    %v1205 = vpop.permute.xlu0 %1204
    %1206 = vrot.lane.b32.xlu0 %v725, 104
    %v1207 = vpop.permute.xlu0 %1206
    %1208 = vrot.lane.b32.xlu0 %v726, 104
    %v1209 = vpop.permute.xlu0 %1208
    %1210 = vrot.lane.b32.xlu0 %v727, 104
    %v1211 = vpop.permute.xlu0 %1210
    %v1216 = vadd.f32 %v1200, %v1205
    %v1217 = vadd.f32 %v1201, %v1207
    %v1218 = vadd.f32 %v1202, %v1209
    %v1219 = vadd.f32 %v1203, %v1211
    %v1220 = vpack.c.bf16 %v1216, %v1216
    %v1221 = vpack.c.bf16 %v1217, %v1217
    %v1222 = vpack.c.bf16 %v1218, %v1218
    %v1223 = vpack.c.bf16 %v1219, %v1219
    %v1228 = vunpack.c.l.b16 %v1220
    %v1229 = vunpack.c.l.b16 %v1221
    %v1230 = vunpack.c.l.b16 %v1222
    %v1231 = vunpack.c.l.b16 %v1223
    %v1232 = vpack.c.b16 %v1229, %v1228
    %v1233 = vpack.c.b16 %v1231, %v1230
    %v1235 = vshrl.u32 %v1232, 16
    %v1237 = vrot.slane %v1235, 7
    %v1238 = vshll.u32 %v1232, 16
    %v1240 = vor.u32 %v1237, %v1238
    %v1242 = vshrl.u32 %v1233, 16
    %v1244 = vrot.slane %v1242, 7
    %v1245 = vshll.u32 %v1233, 16
    %v1247 = vor.u32 %v1244, %v1245
    %v1248 = vsel %vm503, %v1237, %v1247
    %v1251 = vsel %vm522, 0, %v1240
    %v1252 = vunpack.c.l.bf16 %v1251
    %v1253 = vunpack.c.h.bf16 %v1251
    %v1254 = vunpack.c.l.bf16 %v1248
    %v1255 = vunpack.c.h.bf16 %v1248
    %v1256 = vmul.f32 %v1252, %v528
    %v1257 = vmul.f32 %v1253, %v529
    %v1258 = vmul.f32 %v1254, %v530
    %v1259 = vmul.f32 %v1255, %v531
    %v1260 = vpack.c.bf16 %v1256, %v1256
    %v1261 = vpack.c.bf16 %v1257, %v1257
    %v1262 = vpack.c.bf16 %v1258, %v1258
    %v1263 = vpack.c.bf16 %v1259, %v1259
    %v1264 = vrot.slane %v1238, 1
    %v1265 = vor.u32 %v1235, %v1264
    %v1266 = vrot.slane %v1245, 1
    %v1267 = vsel %vm540, %v1265, %v1266
    %v1268 = vor.u32 %v1242, %v1266
    %v1271 = vsel %vm549, %v1268, 0
    %v1272 = vunpack.c.l.bf16 %v1267
    %v1273 = vunpack.c.h.bf16 %v1267
    %v1274 = vunpack.c.l.bf16 %v1271
    %v1275 = vunpack.c.h.bf16 %v1271
    %v1276 = vmul.f32 %v1272, %v555
    %v1277 = vmul.f32 %v1273, %v556
    %v1278 = vmul.f32 %v1274, %v557
    %v1279 = vmul.f32 %v1275, %v558
    %v1280 = vpack.c.bf16 %v1276, %v1276
    %v1281 = vpack.c.bf16 %v1277, %v1277
    %v1282 = vpack.c.bf16 %v1278, %v1278
    %v1283 = vpack.c.bf16 %v1279, %v1279
    %v1288 = vunpack.c.l.b16 %v1260
    %v1289 = vunpack.c.l.b16 %v1261
    %v1290 = vunpack.c.l.b16 %v1262
    %v1291 = vunpack.c.l.b16 %v1263
    %v1292 = vpack.c.b16 %v1289, %v1288
    %v1293 = vpack.c.b16 %v1291, %v1290
    %1294 = vrot.lane.b32.xlu0 %v1232, 8
    %v1295 = vpop.permute.xlu0 %1294
    %1296 = vrot.lane.b32.xlu0 %v1233, 8
    %v1297 = vpop.permute.xlu0 %1296
    %v1302 = vunpack.c.l.b16 %v1280
    %v1303 = vunpack.c.l.b16 %v1281
    %v1304 = vunpack.c.l.b16 %v1282
    %v1305 = vunpack.c.l.b16 %v1283
    %v1306 = vpack.c.b16 %v1303, %v1302
    %v1307 = vpack.c.b16 %v1305, %v1304
    %1308 = vrot.lane.b32.xlu0 %v1306, 16
    %v1309 = vpop.permute.xlu0 %1308
    %1310 = vrot.lane.b32.xlu0 %v1307, 16
    %v1311 = vpop.permute.xlu0 %1310
    %v1314 = vsel %vm595, %v1292, %v1295
    %v1317 = vsel %vm595, %v1293, %v1297
    %v1319 = vsel %vm602, %v1314, %v1309
    %v1321 = vsel %vm602, %v1317, %v1311
    %s1322 = scalar_lea.vmem %s6, 36
    %v1323 = vld [vmem:[%s1322] sm:$0xf]
    %v1324 = vld [vmem:[%s1322 + $0x4] sm:$0xf]
    %v1325 = vld [vmem:[%s1322 + $0x8] sm:$0xf]
    %v1329 = vunpack.c.l.b16 %v1323
    %v1330 = vunpack.c.l.b16 %v1324
    %v1331 = vunpack.c.l.b16 %v1325
    %v1332 = vpack.c.b16 %v1330, %v1329
    %v1333 = vpack.c.b16 %v1331, %v1331
    %v1335 = vsel %vm619, %v1319, 0
    %v1337 = vsel %vm619, %v1321, 0
    %v1340 = vsel %vm624, %v1333, 0
    %1342 = vmatpush.bf16.msra.mxu0 0
    %1343 = vmatpush.bf16.msra.mxu0 0
    %1344 = vmatpush.bf16.msra.mxu0 0
    %1345 = vmatpush.bf16.msra.mxu0 0
    %1346 = vmatpush.bf16.msra.mxu0 0
    %1347 = vmatpush.bf16.msra.mxu0 0
    %1348 = vmatpush.bf16.msra.mxu0 %v1340
    %1349 = vmatpush.bf16.msra.mxu0 %v1332
    %1350 = vmatmul.bf16.gmra.mxu0 %v1335
    %v1351 = vpop.f32.mrf.mxu0
    %v1352 = vadd.f32 0.0, %v1351
    %v1353 = vpop.f32.mrf.mxu0
    %v1354 = vadd.f32 0.0, %v1353
    %1355 = vmatmul.bf16.gmra.mxu0 %v1337
    %v1356 = vpop.f32.mrf.mxu0
    %v1357 = vadd.f32 0.0, %v1356
    %v1358 = vpop.f32.mrf.mxu0
    %v1359 = vadd.f32 0.0, %v1358
    %1360 = vdwg.mxu0
    %s1361 = scalar_lea.vmem %s7, 3
    %v1362 = vld [vmem:[%s1361] sm:$0x1]
    %s1363 = scalar_lea.vmem %s8, 3
    %v1364 = vld [vmem:[%s1363] sm:$0x1]
    %v1365 = vsel %vm595, %v1352, 0.0
    %v1366 = vsel %vm595, %v1354, 0.0
    %v1367 = vadd.f32 %v1365, %v1366
    %v1368 = vsel %vm595, %v1357, 0.0
    %v1369 = vadd.f32 %v1367, %v1368
    %v1370 = vsel %vm595, %v1359, 0.0
    %v1371 = vadd.f32 %v1369, %v1370
    %v1372 = vrot.slane %v1371, 4
    %v1373 = vadd.f32 %v1371, %v1372
    %v1374 = vrot.slane %v1373, 2
    %v1375 = vadd.f32 %v1373, %v1374
    %v1376 = vrot.slane %v1375, 1
    %v1377 = vadd.f32 %v1375, %v1376
    %v1378 = vmul.f32 %v1352, %v1352
    %v1379 = vmul.f32 %v1354, %v1354
    %v1380 = vmul.f32 %v1357, %v1357
    %v1381 = vmul.f32 %v1359, %v1359
    %v1382 = vsel %vm595, %v1378, 0.0
    %v1383 = vsel %vm595, %v1379, 0.0
    %v1384 = vadd.f32 %v1382, %v1383
    %v1385 = vsel %vm595, %v1380, 0.0
    %v1386 = vadd.f32 %v1384, %v1385
    %v1387 = vsel %vm595, %v1381, 0.0
    %v1388 = vadd.f32 %v1386, %v1387
    %v1389 = vrot.slane %v1388, 4
    %v1390 = vadd.f32 %v1388, %v1389
    %v1391 = vrot.slane %v1390, 2
    %v1392 = vadd.f32 %v1390, %v1391
    %v1393 = vrot.slane %v1392, 1
    %v1394 = vadd.f32 %v1392, %v1393
    %v1395 = vmul.f32 %v1377, 0.03125
    %v1396 = vmul.f32 %v1394, 0.03125
    %v1397 = vmul.f32 %v1395, %v1395
    %v1398 = vsub.f32 %v1396, %v1397
    %v1399 = vmax.f32 %v1398, 0.0
    %v1400 = vadd.f32 %v1399, 1e-05
    %v1401 = vrsqrt.pop %v1400
    %v1402 = vmul.f32 %v1401, %v1400
    %v1403 = vmul.f32 %v1402, %v1401
    %v1404 = vmul.f32 0.5, %v1403
    %v1405 = vsub.f32 1.5, %v1404
    %v1406 = vmul.f32 %v1401, %v1405
    %vm1407 = vweird.f32 %v1400
    %vm1408 = vweird.f32 %v1401
    %vm1409 = vmor %vm1407, %vm1408
    %v1410 = vsel %vm1409, %v1401, %v1406
    %v1411 = vmul.f32 %v1362, %v1410
    %v1412 = vmul.f32 %v1395, %v1411
    %v1413 = vsub.f32 %v1364, %v1412
    %v1415 = vperm.slane %v1411, 0
    %v1417 = vmul.f32 %v1352, %v1415
    %v1418 = vmul.f32 %v1354, %v1415
    %v1419 = vmul.f32 %v1357, %v1415
    %v1420 = vmul.f32 %v1359, %v1415
    %v1422 = vperm.slane %v1413, 0
    %v1424 = vadd.f32 %v1417, %v1422
    %v1425 = vadd.f32 %v1418, %v1422
    %v1426 = vadd.f32 %v1419, %v1422
    %v1427 = vadd.f32 %v1420, %v1422
    %v1428 = vmax.f32 %v1424, 0.0
    %v1429 = vmax.f32 %v1425, 0.0
    %v1430 = vmax.f32 %v1426, 0.0
    %v1431 = vmax.f32 %v1427, 0.0
    %v1432 = vpack.c.bf16 %v1428, %v1428
    %v1433 = vpack.c.bf16 %v1429, %v1429
    %v1434 = vpack.c.bf16 %v1430, %v1430
    %v1435 = vpack.c.bf16 %v1431, %v1431
    %v1436 = vunpack.c.l.bf16 %v1432
    %v1437 = vunpack.c.l.bf16 %v1433
    %v1438 = vunpack.c.l.bf16 %v1434
    %v1439 = vunpack.c.l.bf16 %v1435
    %1440 = vrot.lane.b32.xlu0 %v724, 96
    %v1441 = vpop.permute.xlu0 %1440
    %1442 = vrot.lane.b32.xlu0 %v725, 96
    %v1443 = vpop.permute.xlu0 %1442
    %1444 = vrot.lane.b32.xlu0 %v726, 96
    %v1445 = vpop.permute.xlu0 %1444
    %1446 = vrot.lane.b32.xlu0 %v727, 96
    %v1447 = vpop.permute.xlu0 %1446
    %v1452 = vadd.f32 %v1436, %v1441
    %v1453 = vadd.f32 %v1437, %v1443
    %v1454 = vadd.f32 %v1438, %v1445
    %v1455 = vadd.f32 %v1439, %v1447
    %v1456 = vpack.c.bf16 %v1452, %v1452
    %v1457 = vpack.c.bf16 %v1453, %v1453
    %v1458 = vpack.c.bf16 %v1454, %v1454
    %v1459 = vpack.c.bf16 %v1455, %v1455
    %v1464 = vunpack.c.l.b16 %v1456
    %v1465 = vunpack.c.l.b16 %v1457
    %v1466 = vunpack.c.l.b16 %v1458
    %v1467 = vunpack.c.l.b16 %v1459
    %v1468 = vpack.c.b16 %v1465, %v1464
    %v1469 = vpack.c.b16 %v1467, %v1466
    %v1471 = vshrl.u32 %v1468, 16
    %v1473 = vrot.slane %v1471, 7
    %v1474 = vshll.u32 %v1468, 16
    %v1476 = vor.u32 %v1473, %v1474
    %v1478 = vshrl.u32 %v1469, 16
    %v1480 = vrot.slane %v1478, 7
    %v1481 = vshll.u32 %v1469, 16
    %v1483 = vor.u32 %v1480, %v1481
    %v1484 = vsel %vm503, %v1473, %v1483
    %v1487 = vsel %vm522, 0, %v1476
    %v1488 = vunpack.c.l.bf16 %v1487
    %v1489 = vunpack.c.h.bf16 %v1487
    %v1490 = vunpack.c.l.bf16 %v1484
    %v1491 = vunpack.c.h.bf16 %v1484
    %v1492 = vmul.f32 %v1488, %v528
    %v1493 = vmul.f32 %v1489, %v529
    %v1494 = vmul.f32 %v1490, %v530
    %v1495 = vmul.f32 %v1491, %v531
    %v1496 = vpack.c.bf16 %v1492, %v1492
    %v1497 = vpack.c.bf16 %v1493, %v1493
    %v1498 = vpack.c.bf16 %v1494, %v1494
    %v1499 = vpack.c.bf16 %v1495, %v1495
    %v1500 = vrot.slane %v1474, 1
    %v1501 = vor.u32 %v1471, %v1500
    %v1502 = vrot.slane %v1481, 1
    %v1503 = vsel %vm540, %v1501, %v1502
    %v1504 = vor.u32 %v1478, %v1502
    %v1507 = vsel %vm549, %v1504, 0
    %v1508 = vunpack.c.l.bf16 %v1503
    %v1509 = vunpack.c.h.bf16 %v1503
    %v1510 = vunpack.c.l.bf16 %v1507
    %v1511 = vunpack.c.h.bf16 %v1507
    %v1512 = vmul.f32 %v1508, %v555
    %v1513 = vmul.f32 %v1509, %v556
    %v1514 = vmul.f32 %v1510, %v557
    %v1515 = vmul.f32 %v1511, %v558
    %v1516 = vpack.c.bf16 %v1512, %v1512
    %v1517 = vpack.c.bf16 %v1513, %v1513
    %v1518 = vpack.c.bf16 %v1514, %v1514
    %v1519 = vpack.c.bf16 %v1515, %v1515
    %v1524 = vunpack.c.l.b16 %v1496
    %v1525 = vunpack.c.l.b16 %v1497
    %v1526 = vunpack.c.l.b16 %v1498
    %v1527 = vunpack.c.l.b16 %v1499
    %v1528 = vpack.c.b16 %v1525, %v1524
    %v1529 = vpack.c.b16 %v1527, %v1526
    %1530 = vrot.lane.b32.xlu0 %v1468, 8
    %v1531 = vpop.permute.xlu0 %1530
    %1532 = vrot.lane.b32.xlu0 %v1469, 8
    %v1533 = vpop.permute.xlu0 %1532
    %v1538 = vunpack.c.l.b16 %v1516
    %v1539 = vunpack.c.l.b16 %v1517
    %v1540 = vunpack.c.l.b16 %v1518
    %v1541 = vunpack.c.l.b16 %v1519
    %v1542 = vpack.c.b16 %v1539, %v1538
    %v1543 = vpack.c.b16 %v1541, %v1540
    %1544 = vrot.lane.b32.xlu0 %v1542, 16
    %v1545 = vpop.permute.xlu0 %1544
    %1546 = vrot.lane.b32.xlu0 %v1543, 16
    %v1547 = vpop.permute.xlu0 %1546
    %v1550 = vsel %vm595, %v1528, %v1531
    %v1553 = vsel %vm595, %v1529, %v1533
    %v1555 = vsel %vm602, %v1550, %v1545
    %v1557 = vsel %vm602, %v1553, %v1547
    %s1558 = scalar_lea.vmem %s6, 48
    %v1559 = vld [vmem:[%s1558] sm:$0xf]
    %v1560 = vld [vmem:[%s1558 + $0x4] sm:$0xf]
    %v1561 = vld [vmem:[%s1558 + $0x8] sm:$0xf]
    %v1565 = vunpack.c.l.b16 %v1559
    %v1566 = vunpack.c.l.b16 %v1560
    %v1567 = vunpack.c.l.b16 %v1561
    %v1568 = vpack.c.b16 %v1566, %v1565
    %v1569 = vpack.c.b16 %v1567, %v1567
    %v1571 = vsel %vm619, %v1555, 0
    %v1573 = vsel %vm619, %v1557, 0
    %v1576 = vsel %vm624, %v1569, 0
    %1578 = vmatpush.bf16.msra.mxu0 0
    %1579 = vmatpush.bf16.msra.mxu0 0
    %1580 = vmatpush.bf16.msra.mxu0 0
    %1581 = vmatpush.bf16.msra.mxu0 0
    %1582 = vmatpush.bf16.msra.mxu0 0
    %1583 = vmatpush.bf16.msra.mxu0 0
    %1584 = vmatpush.bf16.msra.mxu0 %v1576
    %1585 = vmatpush.bf16.msra.mxu0 %v1568
    %1586 = vmatmul.bf16.gmra.mxu0 %v1571
    %v1587 = vpop.f32.mrf.mxu0
    %v1588 = vadd.f32 0.0, %v1587
    %v1589 = vpop.f32.mrf.mxu0
    %v1590 = vadd.f32 0.0, %v1589
    %1591 = vmatmul.bf16.gmra.mxu0 %v1573
    %v1592 = vpop.f32.mrf.mxu0
    %v1593 = vadd.f32 0.0, %v1592
    %v1594 = vpop.f32.mrf.mxu0
    %v1595 = vadd.f32 0.0, %v1594
    %1596 = vdwg.mxu0
    %s1597 = scalar_lea.vmem %s7, 4
    %v1598 = vld [vmem:[%s1597] sm:$0x1]
    %s1599 = scalar_lea.vmem %s8, 4
    %v1600 = vld [vmem:[%s1599] sm:$0x1]
    %v1601 = vsel %vm595, %v1588, 0.0
    %v1602 = vsel %vm595, %v1590, 0.0
    %v1603 = vadd.f32 %v1601, %v1602
    %v1604 = vsel %vm595, %v1593, 0.0
    %v1605 = vadd.f32 %v1603, %v1604
    %v1606 = vsel %vm595, %v1595, 0.0
    %v1607 = vadd.f32 %v1605, %v1606
    %v1608 = vrot.slane %v1607, 4
    %v1609 = vadd.f32 %v1607, %v1608
    %v1610 = vrot.slane %v1609, 2
    %v1611 = vadd.f32 %v1609, %v1610
    %v1612 = vrot.slane %v1611, 1
    %v1613 = vadd.f32 %v1611, %v1612
    %v1614 = vmul.f32 %v1588, %v1588
    %v1615 = vmul.f32 %v1590, %v1590
    %v1616 = vmul.f32 %v1593, %v1593
    %v1617 = vmul.f32 %v1595, %v1595
    %v1618 = vsel %vm595, %v1614, 0.0
    %v1619 = vsel %vm595, %v1615, 0.0
    %v1620 = vadd.f32 %v1618, %v1619
    %v1621 = vsel %vm595, %v1616, 0.0
    %v1622 = vadd.f32 %v1620, %v1621
    %v1623 = vsel %vm595, %v1617, 0.0
    %v1624 = vadd.f32 %v1622, %v1623
    %v1625 = vrot.slane %v1624, 4
    %v1626 = vadd.f32 %v1624, %v1625
    %v1627 = vrot.slane %v1626, 2
    %v1628 = vadd.f32 %v1626, %v1627
    %v1629 = vrot.slane %v1628, 1
    %v1630 = vadd.f32 %v1628, %v1629
    %v1631 = vmul.f32 %v1613, 0.03125
    %v1632 = vmul.f32 %v1630, 0.03125
    %v1633 = vmul.f32 %v1631, %v1631
    %v1634 = vsub.f32 %v1632, %v1633
    %v1635 = vmax.f32 %v1634, 0.0
    %v1636 = vadd.f32 %v1635, 1e-05
    %v1637 = vrsqrt.pop %v1636
    %v1638 = vmul.f32 %v1637, %v1636
    %v1639 = vmul.f32 %v1638, %v1637
    %v1640 = vmul.f32 0.5, %v1639
    %v1641 = vsub.f32 1.5, %v1640
    %v1642 = vmul.f32 %v1637, %v1641
    %vm1643 = vweird.f32 %v1636
    %vm1644 = vweird.f32 %v1637
    %vm1645 = vmor %vm1643, %vm1644
    %v1646 = vsel %vm1645, %v1637, %v1642
    %v1647 = vmul.f32 %v1598, %v1646
    %v1648 = vmul.f32 %v1631, %v1647
    %v1649 = vsub.f32 %v1600, %v1648
    %v1651 = vperm.slane %v1647, 0
    %v1653 = vmul.f32 %v1588, %v1651
    %v1654 = vmul.f32 %v1590, %v1651
    %v1655 = vmul.f32 %v1593, %v1651
    %v1656 = vmul.f32 %v1595, %v1651
    %v1658 = vperm.slane %v1649, 0
    %v1660 = vadd.f32 %v1653, %v1658
    %v1661 = vadd.f32 %v1654, %v1658
    %v1662 = vadd.f32 %v1655, %v1658
    %v1663 = vadd.f32 %v1656, %v1658
    %v1664 = vmax.f32 %v1660, 0.0
    %v1665 = vmax.f32 %v1661, 0.0
    %v1666 = vmax.f32 %v1662, 0.0
    %v1667 = vmax.f32 %v1663, 0.0
    %v1668 = vpack.c.bf16 %v1664, %v1664
    %v1669 = vpack.c.bf16 %v1665, %v1665
    %v1670 = vpack.c.bf16 %v1666, %v1666
    %v1671 = vpack.c.bf16 %v1667, %v1667
    %v1672 = vunpack.c.l.bf16 %v1668
    %v1673 = vunpack.c.l.bf16 %v1669
    %v1674 = vunpack.c.l.bf16 %v1670
    %v1675 = vunpack.c.l.bf16 %v1671
    %1676 = vrot.lane.b32.xlu0 %v724, 88
    %v1677 = vpop.permute.xlu0 %1676
    %1678 = vrot.lane.b32.xlu0 %v725, 88
    %v1679 = vpop.permute.xlu0 %1678
    %1680 = vrot.lane.b32.xlu0 %v726, 88
    %v1681 = vpop.permute.xlu0 %1680
    %1682 = vrot.lane.b32.xlu0 %v727, 88
    %v1683 = vpop.permute.xlu0 %1682
    %v1688 = vadd.f32 %v1672, %v1677
    %v1689 = vadd.f32 %v1673, %v1679
    %v1690 = vadd.f32 %v1674, %v1681
    %v1691 = vadd.f32 %v1675, %v1683
    %v1692 = vpack.c.bf16 %v1688, %v1688
    %v1693 = vpack.c.bf16 %v1689, %v1689
    %v1694 = vpack.c.bf16 %v1690, %v1690
    %v1695 = vpack.c.bf16 %v1691, %v1691
    %v1700 = vunpack.c.l.b16 %v1692
    %v1701 = vunpack.c.l.b16 %v1693
    %v1702 = vunpack.c.l.b16 %v1694
    %v1703 = vunpack.c.l.b16 %v1695
    %v1704 = vpack.c.b16 %v1701, %v1700
    %v1705 = vpack.c.b16 %v1703, %v1702
    %v1707 = vshrl.u32 %v1704, 16
    %v1709 = vrot.slane %v1707, 7
    %v1710 = vshll.u32 %v1704, 16
    %v1712 = vor.u32 %v1709, %v1710
    %v1714 = vshrl.u32 %v1705, 16
    %v1716 = vrot.slane %v1714, 7
    %v1717 = vshll.u32 %v1705, 16
    %v1719 = vor.u32 %v1716, %v1717
    %v1720 = vsel %vm503, %v1709, %v1719
    %v1723 = vsel %vm522, 0, %v1712
    %v1724 = vunpack.c.l.bf16 %v1723
    %v1725 = vunpack.c.h.bf16 %v1723
    %v1726 = vunpack.c.l.bf16 %v1720
    %v1727 = vunpack.c.h.bf16 %v1720
    %v1728 = vmul.f32 %v1724, %v528
    %v1729 = vmul.f32 %v1725, %v529
    %v1730 = vmul.f32 %v1726, %v530
    %v1731 = vmul.f32 %v1727, %v531
    %v1732 = vpack.c.bf16 %v1728, %v1728
    %v1733 = vpack.c.bf16 %v1729, %v1729
    %v1734 = vpack.c.bf16 %v1730, %v1730
    %v1735 = vpack.c.bf16 %v1731, %v1731
    %v1736 = vrot.slane %v1710, 1
    %v1737 = vor.u32 %v1707, %v1736
    %v1738 = vrot.slane %v1717, 1
    %v1739 = vsel %vm540, %v1737, %v1738
    %v1740 = vor.u32 %v1714, %v1738
    %v1743 = vsel %vm549, %v1740, 0
    %v1744 = vunpack.c.l.bf16 %v1739
    %v1745 = vunpack.c.h.bf16 %v1739
    %v1746 = vunpack.c.l.bf16 %v1743
    %v1747 = vunpack.c.h.bf16 %v1743
    %v1748 = vmul.f32 %v1744, %v555
    %v1749 = vmul.f32 %v1745, %v556
    %v1750 = vmul.f32 %v1746, %v557
    %v1751 = vmul.f32 %v1747, %v558
    %v1752 = vpack.c.bf16 %v1748, %v1748
    %v1753 = vpack.c.bf16 %v1749, %v1749
    %v1754 = vpack.c.bf16 %v1750, %v1750
    %v1755 = vpack.c.bf16 %v1751, %v1751
    %v1760 = vunpack.c.l.b16 %v1732
    %v1761 = vunpack.c.l.b16 %v1733
    %v1762 = vunpack.c.l.b16 %v1734
    %v1763 = vunpack.c.l.b16 %v1735
    %v1764 = vpack.c.b16 %v1761, %v1760
    %v1765 = vpack.c.b16 %v1763, %v1762
    %1766 = vrot.lane.b32.xlu0 %v1704, 8
    %v1767 = vpop.permute.xlu0 %1766
    %1768 = vrot.lane.b32.xlu0 %v1705, 8
    %v1769 = vpop.permute.xlu0 %1768
    %v1774 = vunpack.c.l.b16 %v1752
    %v1775 = vunpack.c.l.b16 %v1753
    %v1776 = vunpack.c.l.b16 %v1754
    %v1777 = vunpack.c.l.b16 %v1755
    %v1778 = vpack.c.b16 %v1775, %v1774
    %v1779 = vpack.c.b16 %v1777, %v1776
    %1780 = vrot.lane.b32.xlu0 %v1778, 16
    %v1781 = vpop.permute.xlu0 %1780
    %1782 = vrot.lane.b32.xlu0 %v1779, 16
    %v1783 = vpop.permute.xlu0 %1782
    %v1786 = vsel %vm595, %v1764, %v1767
    %v1789 = vsel %vm595, %v1765, %v1769
    %v1791 = vsel %vm602, %v1786, %v1781
    %v1793 = vsel %vm602, %v1789, %v1783
    %s1794 = scalar_lea.vmem %s6, 60
    %v1795 = vld [vmem:[%s1794] sm:$0xf]
    %v1796 = vld [vmem:[%s1794 + $0x4] sm:$0xf]
    %v1797 = vld [vmem:[%s1794 + $0x8] sm:$0xf]
    %v1801 = vunpack.c.l.b16 %v1795
    %v1802 = vunpack.c.l.b16 %v1796
    %v1803 = vunpack.c.l.b16 %v1797
    %v1804 = vpack.c.b16 %v1802, %v1801
    %v1805 = vpack.c.b16 %v1803, %v1803
    %v1807 = vsel %vm619, %v1791, 0
    %v1809 = vsel %vm619, %v1793, 0
    %v1812 = vsel %vm624, %v1805, 0
    %1814 = vmatpush.bf16.msra.mxu0 0
    %1815 = vmatpush.bf16.msra.mxu0 0
    %1816 = vmatpush.bf16.msra.mxu0 0
    %1817 = vmatpush.bf16.msra.mxu0 0
    %1818 = vmatpush.bf16.msra.mxu0 0
    %1819 = vmatpush.bf16.msra.mxu0 0
    %1820 = vmatpush.bf16.msra.mxu0 %v1812
    %1821 = vmatpush.bf16.msra.mxu0 %v1804
    %1822 = vmatmul.bf16.gmra.mxu0 %v1807
    %v1823 = vpop.f32.mrf.mxu0
    %v1824 = vadd.f32 0.0, %v1823
    %v1825 = vpop.f32.mrf.mxu0
    %v1826 = vadd.f32 0.0, %v1825
    %1827 = vmatmul.bf16.gmra.mxu0 %v1809
    %v1828 = vpop.f32.mrf.mxu0
    %v1829 = vadd.f32 0.0, %v1828
    %v1830 = vpop.f32.mrf.mxu0
    %v1831 = vadd.f32 0.0, %v1830
    %1832 = vdwg.mxu0
    %s1833 = scalar_lea.vmem %s7, 5
    %v1834 = vld [vmem:[%s1833] sm:$0x1]
    %s1835 = scalar_lea.vmem %s8, 5
    %v1836 = vld [vmem:[%s1835] sm:$0x1]
    %v1837 = vsel %vm595, %v1824, 0.0
    %v1838 = vsel %vm595, %v1826, 0.0
    %v1839 = vadd.f32 %v1837, %v1838
    %v1840 = vsel %vm595, %v1829, 0.0
    %v1841 = vadd.f32 %v1839, %v1840
    %v1842 = vsel %vm595, %v1831, 0.0
    %v1843 = vadd.f32 %v1841, %v1842
    %v1844 = vrot.slane %v1843, 4
    %v1845 = vadd.f32 %v1843, %v1844
    %v1846 = vrot.slane %v1845, 2
    %v1847 = vadd.f32 %v1845, %v1846
    %v1848 = vrot.slane %v1847, 1
    %v1849 = vadd.f32 %v1847, %v1848
    %v1850 = vmul.f32 %v1824, %v1824
    %v1851 = vmul.f32 %v1826, %v1826
    %v1852 = vmul.f32 %v1829, %v1829
    %v1853 = vmul.f32 %v1831, %v1831
    %v1854 = vsel %vm595, %v1850, 0.0
    %v1855 = vsel %vm595, %v1851, 0.0
    %v1856 = vadd.f32 %v1854, %v1855
    %v1857 = vsel %vm595, %v1852, 0.0
    %v1858 = vadd.f32 %v1856, %v1857
    %v1859 = vsel %vm595, %v1853, 0.0
    %v1860 = vadd.f32 %v1858, %v1859
    %v1861 = vrot.slane %v1860, 4
    %v1862 = vadd.f32 %v1860, %v1861
    %v1863 = vrot.slane %v1862, 2
    %v1864 = vadd.f32 %v1862, %v1863
    %v1865 = vrot.slane %v1864, 1
    %v1866 = vadd.f32 %v1864, %v1865
    %v1867 = vmul.f32 %v1849, 0.03125
    %v1868 = vmul.f32 %v1866, 0.03125
    %v1869 = vmul.f32 %v1867, %v1867
    %v1870 = vsub.f32 %v1868, %v1869
    %v1871 = vmax.f32 %v1870, 0.0
    %v1872 = vadd.f32 %v1871, 1e-05
    %v1873 = vrsqrt.pop %v1872
    %v1874 = vmul.f32 %v1873, %v1872
    %v1875 = vmul.f32 %v1874, %v1873
    %v1876 = vmul.f32 0.5, %v1875
    %v1877 = vsub.f32 1.5, %v1876
    %v1878 = vmul.f32 %v1873, %v1877
    %vm1879 = vweird.f32 %v1872
    %vm1880 = vweird.f32 %v1873
    %vm1881 = vmor %vm1879, %vm1880
    %v1882 = vsel %vm1881, %v1873, %v1878
    %v1883 = vmul.f32 %v1834, %v1882
    %v1884 = vmul.f32 %v1867, %v1883
    %v1885 = vsub.f32 %v1836, %v1884
    %v1887 = vperm.slane %v1883, 0
    %v1889 = vmul.f32 %v1824, %v1887
    %v1890 = vmul.f32 %v1826, %v1887
    %v1891 = vmul.f32 %v1829, %v1887
    %v1892 = vmul.f32 %v1831, %v1887
    %v1894 = vperm.slane %v1885, 0
    %v1896 = vadd.f32 %v1889, %v1894
    %v1897 = vadd.f32 %v1890, %v1894
    %v1898 = vadd.f32 %v1891, %v1894
    %v1899 = vadd.f32 %v1892, %v1894
    %v1900 = vmax.f32 %v1896, 0.0
    %v1901 = vmax.f32 %v1897, 0.0
    %v1902 = vmax.f32 %v1898, 0.0
    %v1903 = vmax.f32 %v1899, 0.0
    %v1904 = vpack.c.bf16 %v1900, %v1900
    %v1905 = vpack.c.bf16 %v1901, %v1901
    %v1906 = vpack.c.bf16 %v1902, %v1902
    %v1907 = vpack.c.bf16 %v1903, %v1903
    %v1908 = vunpack.c.l.bf16 %v1904
    %v1909 = vunpack.c.l.bf16 %v1905
    %v1910 = vunpack.c.l.bf16 %v1906
    %v1911 = vunpack.c.l.bf16 %v1907
    %1912 = vrot.lane.b32.xlu0 %v724, 80
    %v1913 = vpop.permute.xlu0 %1912
    %1914 = vrot.lane.b32.xlu0 %v725, 80
    %v1915 = vpop.permute.xlu0 %1914
    %1916 = vrot.lane.b32.xlu0 %v726, 80
    %v1917 = vpop.permute.xlu0 %1916
    %1918 = vrot.lane.b32.xlu0 %v727, 80
    %v1919 = vpop.permute.xlu0 %1918
    %v1924 = vadd.f32 %v1908, %v1913
    %v1925 = vadd.f32 %v1909, %v1915
    %v1926 = vadd.f32 %v1910, %v1917
    %v1927 = vadd.f32 %v1911, %v1919
    %v1928 = vpack.c.bf16 %v1924, %v1924
    %v1929 = vpack.c.bf16 %v1925, %v1925
    %v1930 = vpack.c.bf16 %v1926, %v1926
    %v1931 = vpack.c.bf16 %v1927, %v1927
    %v1936 = vunpack.c.l.b16 %v1928
    %v1937 = vunpack.c.l.b16 %v1929
    %v1938 = vunpack.c.l.b16 %v1930
    %v1939 = vunpack.c.l.b16 %v1931
    %v1940 = vpack.c.b16 %v1937, %v1936
    %v1941 = vpack.c.b16 %v1939, %v1938
    %v1943 = vshrl.u32 %v1940, 16
    %v1945 = vrot.slane %v1943, 7
    %v1946 = vshll.u32 %v1940, 16
    %v1948 = vor.u32 %v1945, %v1946
    %v1950 = vshrl.u32 %v1941, 16
    %v1952 = vrot.slane %v1950, 7
    %v1953 = vshll.u32 %v1941, 16
    %v1955 = vor.u32 %v1952, %v1953
    %v1956 = vsel %vm503, %v1945, %v1955
    %v1959 = vsel %vm522, 0, %v1948
    %v1960 = vunpack.c.l.bf16 %v1959
    %v1961 = vunpack.c.h.bf16 %v1959
    %v1962 = vunpack.c.l.bf16 %v1956
    %v1963 = vunpack.c.h.bf16 %v1956
    %v1964 = vmul.f32 %v1960, %v528
    %v1965 = vmul.f32 %v1961, %v529
    %v1966 = vmul.f32 %v1962, %v530
    %v1967 = vmul.f32 %v1963, %v531
    %v1968 = vpack.c.bf16 %v1964, %v1964
    %v1969 = vpack.c.bf16 %v1965, %v1965
    %v1970 = vpack.c.bf16 %v1966, %v1966
    %v1971 = vpack.c.bf16 %v1967, %v1967
    %v1972 = vrot.slane %v1946, 1
    %v1973 = vor.u32 %v1943, %v1972
    %v1974 = vrot.slane %v1953, 1
    %v1975 = vsel %vm540, %v1973, %v1974
    %v1976 = vor.u32 %v1950, %v1974
    %v1979 = vsel %vm549, %v1976, 0
    %v1980 = vunpack.c.l.bf16 %v1975
    %v1981 = vunpack.c.h.bf16 %v1975
    %v1982 = vunpack.c.l.bf16 %v1979
    %v1983 = vunpack.c.h.bf16 %v1979
    %v1984 = vmul.f32 %v1980, %v555
    %v1985 = vmul.f32 %v1981, %v556
    %v1986 = vmul.f32 %v1982, %v557
    %v1987 = vmul.f32 %v1983, %v558
    %v1988 = vpack.c.bf16 %v1984, %v1984
    %v1989 = vpack.c.bf16 %v1985, %v1985
    %v1990 = vpack.c.bf16 %v1986, %v1986
    %v1991 = vpack.c.bf16 %v1987, %v1987
    %v1996 = vunpack.c.l.b16 %v1968
    %v1997 = vunpack.c.l.b16 %v1969
    %v1998 = vunpack.c.l.b16 %v1970
    %v1999 = vunpack.c.l.b16 %v1971
    %v2000 = vpack.c.b16 %v1997, %v1996
    %v2001 = vpack.c.b16 %v1999, %v1998
    %2002 = vrot.lane.b32.xlu0 %v1940, 8
    %v2003 = vpop.permute.xlu0 %2002
    %2004 = vrot.lane.b32.xlu0 %v1941, 8
    %v2005 = vpop.permute.xlu0 %2004
    %v2010 = vunpack.c.l.b16 %v1988
    %v2011 = vunpack.c.l.b16 %v1989
    %v2012 = vunpack.c.l.b16 %v1990
    %v2013 = vunpack.c.l.b16 %v1991
    %v2014 = vpack.c.b16 %v2011, %v2010
    %v2015 = vpack.c.b16 %v2013, %v2012
    %2016 = vrot.lane.b32.xlu0 %v2014, 16
    %v2017 = vpop.permute.xlu0 %2016
    %2018 = vrot.lane.b32.xlu0 %v2015, 16
    %v2019 = vpop.permute.xlu0 %2018
    %v2022 = vsel %vm595, %v2000, %v2003
    %v2025 = vsel %vm595, %v2001, %v2005
    %v2027 = vsel %vm602, %v2022, %v2017
    %v2029 = vsel %vm602, %v2025, %v2019
    %s2030 = scalar_lea.vmem %s6, 72
    %v2031 = vld [vmem:[%s2030] sm:$0xf]
    %v2032 = vld [vmem:[%s2030 + $0x4] sm:$0xf]
    %v2033 = vld [vmem:[%s2030 + $0x8] sm:$0xf]
    %v2037 = vunpack.c.l.b16 %v2031
    %v2038 = vunpack.c.l.b16 %v2032
    %v2039 = vunpack.c.l.b16 %v2033
    %v2040 = vpack.c.b16 %v2038, %v2037
    %v2041 = vpack.c.b16 %v2039, %v2039
    %v2043 = vsel %vm619, %v2027, 0
    %v2045 = vsel %vm619, %v2029, 0
    %v2048 = vsel %vm624, %v2041, 0
    %2050 = vmatpush.bf16.msra.mxu0 0
    %2051 = vmatpush.bf16.msra.mxu0 0
    %2052 = vmatpush.bf16.msra.mxu0 0
    %2053 = vmatpush.bf16.msra.mxu0 0
    %2054 = vmatpush.bf16.msra.mxu0 0
    %2055 = vmatpush.bf16.msra.mxu0 0
    %2056 = vmatpush.bf16.msra.mxu0 %v2048
    %2057 = vmatpush.bf16.msra.mxu0 %v2040
    %2058 = vmatmul.bf16.gmra.mxu0 %v2043
    %v2059 = vpop.f32.mrf.mxu0
    %v2060 = vadd.f32 0.0, %v2059
    %v2061 = vpop.f32.mrf.mxu0
    %v2062 = vadd.f32 0.0, %v2061
    %2063 = vmatmul.bf16.gmra.mxu0 %v2045
    %v2064 = vpop.f32.mrf.mxu0
    %v2065 = vadd.f32 0.0, %v2064
    %v2066 = vpop.f32.mrf.mxu0
    %v2067 = vadd.f32 0.0, %v2066
    %2068 = vdwg.mxu0
    %s2069 = scalar_lea.vmem %s7, 6
    %v2070 = vld [vmem:[%s2069] sm:$0x1]
    %s2071 = scalar_lea.vmem %s8, 6
    %v2072 = vld [vmem:[%s2071] sm:$0x1]
    %v2073 = vsel %vm595, %v2060, 0.0
    %v2074 = vsel %vm595, %v2062, 0.0
    %v2075 = vadd.f32 %v2073, %v2074
    %v2076 = vsel %vm595, %v2065, 0.0
    %v2077 = vadd.f32 %v2075, %v2076
    %v2078 = vsel %vm595, %v2067, 0.0
    %v2079 = vadd.f32 %v2077, %v2078
    %v2080 = vrot.slane %v2079, 4
    %v2081 = vadd.f32 %v2079, %v2080
    %v2082 = vrot.slane %v2081, 2
    %v2083 = vadd.f32 %v2081, %v2082
    %v2084 = vrot.slane %v2083, 1
    %v2085 = vadd.f32 %v2083, %v2084
    %v2086 = vmul.f32 %v2060, %v2060
    %v2087 = vmul.f32 %v2062, %v2062
    %v2088 = vmul.f32 %v2065, %v2065
    %v2089 = vmul.f32 %v2067, %v2067
    %v2090 = vsel %vm595, %v2086, 0.0
    %v2091 = vsel %vm595, %v2087, 0.0
    %v2092 = vadd.f32 %v2090, %v2091
    %v2093 = vsel %vm595, %v2088, 0.0
    %v2094 = vadd.f32 %v2092, %v2093
    %v2095 = vsel %vm595, %v2089, 0.0
    %v2096 = vadd.f32 %v2094, %v2095
    %v2097 = vrot.slane %v2096, 4
    %v2098 = vadd.f32 %v2096, %v2097
    %v2099 = vrot.slane %v2098, 2
    %v2100 = vadd.f32 %v2098, %v2099
    %v2101 = vrot.slane %v2100, 1
    %v2102 = vadd.f32 %v2100, %v2101
    %v2103 = vmul.f32 %v2085, 0.03125
    %v2104 = vmul.f32 %v2102, 0.03125
    %v2105 = vmul.f32 %v2103, %v2103
    %v2106 = vsub.f32 %v2104, %v2105
    %v2107 = vmax.f32 %v2106, 0.0
    %v2108 = vadd.f32 %v2107, 1e-05
    %v2109 = vrsqrt.pop %v2108
    %v2110 = vmul.f32 %v2109, %v2108
    %v2111 = vmul.f32 %v2110, %v2109
    %v2112 = vmul.f32 0.5, %v2111
    %v2113 = vsub.f32 1.5, %v2112
    %v2114 = vmul.f32 %v2109, %v2113
    %vm2115 = vweird.f32 %v2108
    %vm2116 = vweird.f32 %v2109
    %vm2117 = vmor %vm2115, %vm2116
    %v2118 = vsel %vm2117, %v2109, %v2114
    %v2119 = vmul.f32 %v2070, %v2118
    %v2120 = vmul.f32 %v2103, %v2119
    %v2121 = vsub.f32 %v2072, %v2120
    %v2123 = vperm.slane %v2119, 0
    %v2125 = vmul.f32 %v2060, %v2123
    %v2126 = vmul.f32 %v2062, %v2123
    %v2127 = vmul.f32 %v2065, %v2123
    %v2128 = vmul.f32 %v2067, %v2123
    %v2130 = vperm.slane %v2121, 0
    %v2132 = vadd.f32 %v2125, %v2130
    %v2133 = vadd.f32 %v2126, %v2130
    %v2134 = vadd.f32 %v2127, %v2130
    %v2135 = vadd.f32 %v2128, %v2130
    %v2136 = vmax.f32 %v2132, 0.0
    %v2137 = vmax.f32 %v2133, 0.0
    %v2138 = vmax.f32 %v2134, 0.0
    %v2139 = vmax.f32 %v2135, 0.0
    %v2140 = vpack.c.bf16 %v2136, %v2136
    %v2141 = vpack.c.bf16 %v2137, %v2137
    %v2142 = vpack.c.bf16 %v2138, %v2138
    %v2143 = vpack.c.bf16 %v2139, %v2139
    %v2148 = vunpack.c.l.b16 %v716
    %v2149 = vunpack.c.l.b16 %v717
    %v2150 = vunpack.c.l.b16 %v718
    %v2151 = vunpack.c.l.b16 %v719
    %v2152 = vpack.c.b16 %v2149, %v2148
    %v2153 = vpack.c.b16 %v2151, %v2150
    %v2158 = vunpack.c.l.b16 %v960
    %v2159 = vunpack.c.l.b16 %v961
    %v2160 = vunpack.c.l.b16 %v962
    %v2161 = vunpack.c.l.b16 %v963
    %v2162 = vpack.c.b16 %v2159, %v2158
    %v2163 = vpack.c.b16 %v2161, %v2160
    %2164 = vrot.lane.b32.xlu0 %v2162, 8
    %v2165 = vpop.permute.xlu0 %2164
    %2166 = vrot.lane.b32.xlu0 %v2163, 8
    %v2167 = vpop.permute.xlu0 %2166
    %v2172 = vunpack.c.l.b16 %v1196
    %v2173 = vunpack.c.l.b16 %v1197
    %v2174 = vunpack.c.l.b16 %v1198
    %v2175 = vunpack.c.l.b16 %v1199
    %v2176 = vpack.c.b16 %v2173, %v2172
    %v2177 = vpack.c.b16 %v2175, %v2174
    %2178 = vrot.lane.b32.xlu0 %v2176, 16
    %v2179 = vpop.permute.xlu0 %2178
    %2180 = vrot.lane.b32.xlu0 %v2177, 16
    %v2181 = vpop.permute.xlu0 %2180
    %v2186 = vunpack.c.l.b16 %v1432
    %v2187 = vunpack.c.l.b16 %v1433
    %v2188 = vunpack.c.l.b16 %v1434
    %v2189 = vunpack.c.l.b16 %v1435
    %v2190 = vpack.c.b16 %v2187, %v2186
    %v2191 = vpack.c.b16 %v2189, %v2188
    %2192 = vrot.lane.b32.xlu0 %v2190, 24
    %v2193 = vpop.permute.xlu0 %2192
    %2194 = vrot.lane.b32.xlu0 %v2191, 24
    %v2195 = vpop.permute.xlu0 %2194
    %v2200 = vunpack.c.l.b16 %v1668
    %v2201 = vunpack.c.l.b16 %v1669
    %v2202 = vunpack.c.l.b16 %v1670
    %v2203 = vunpack.c.l.b16 %v1671
    %v2204 = vpack.c.b16 %v2201, %v2200
    %v2205 = vpack.c.b16 %v2203, %v2202
    %2206 = vrot.lane.b32.xlu0 %v2204, 32
    %v2207 = vpop.permute.xlu0 %2206
    %2208 = vrot.lane.b32.xlu0 %v2205, 32
    %v2209 = vpop.permute.xlu0 %2208
    %v2214 = vunpack.c.l.b16 %v1904
    %v2215 = vunpack.c.l.b16 %v1905
    %v2216 = vunpack.c.l.b16 %v1906
    %v2217 = vunpack.c.l.b16 %v1907
    %v2218 = vpack.c.b16 %v2215, %v2214
    %v2219 = vpack.c.b16 %v2217, %v2216
    %2220 = vrot.lane.b32.xlu0 %v2218, 40
    %v2221 = vpop.permute.xlu0 %2220
    %2222 = vrot.lane.b32.xlu0 %v2219, 40
    %v2223 = vpop.permute.xlu0 %2222
    %v2228 = vunpack.c.l.b16 %v2140
    %v2229 = vunpack.c.l.b16 %v2141
    %v2230 = vunpack.c.l.b16 %v2142
    %v2231 = vunpack.c.l.b16 %v2143
    %v2232 = vpack.c.b16 %v2229, %v2228
    %v2233 = vpack.c.b16 %v2231, %v2230
    %2234 = vrot.lane.b32.xlu0 %v2232, 48
    %v2235 = vpop.permute.xlu0 %2234
    %2236 = vrot.lane.b32.xlu0 %v2233, 48
    %v2237 = vpop.permute.xlu0 %2236
    %v2240 = vsel %vm595, %v2152, %v2165
    %v2243 = vsel %vm595, %v2153, %v2167
    %v2245 = vsel %vm602, %v2240, %v2179
    %v2247 = vsel %vm602, %v2243, %v2181
    %v2249 = vsel %vm619, %v2245, %v2193
    %v2251 = vsel %vm619, %v2247, %v2195
    %vm2252 = vcmask 261120
    %v2254 = vsel %vm2252, %v2249, %v2207
    %v2256 = vsel %vm2252, %v2251, %v2209
    %vm2257 = vcmask 326656
    %v2259 = vsel %vm2257, %v2254, %v2221
    %v2261 = vsel %vm2257, %v2256, %v2223
    %vm2262 = vcmask 392192
    %v2264 = vsel %vm2262, %v2259, %v2235
    %v2266 = vsel %vm2262, %v2261, %v2237
    %vm2267 = vcmask 457728
    %v2268 = vsel %vm2267, %v2264, %v501
    %v2269 = vsel %vm2267, %v2266, %v502
    %v2270 = vld [vmem:[#allocation2] sm:$0xf]
    %v2271 = vld [vmem:[#allocation2 + $0x4] sm:$0xf]
    %v2272 = vld [vmem:[#allocation2 + $0x8] sm:$0xf]
    %v2273 = vld [vmem:[#allocation2 + $0xc] sm:$0xf]
    %v2274 = vld [vmem:[#allocation2 + $0x10] sm:$0xf]
    %v2275 = vld [vmem:[#allocation2 + $0x14] sm:$0xf]
    %v2276 = vld [vmem:[#allocation2 + $0x18] sm:$0xf]
    %v2277 = vld [vmem:[#allocation2 + $0x1c] sm:$0xf]
    %v2286 = vunpack.c.l.b16 %v2270
    %v2287 = vunpack.c.l.b16 %v2271
    %v2288 = vunpack.c.l.b16 %v2272
    %v2289 = vunpack.c.l.b16 %v2273
    %v2290 = vunpack.c.l.b16 %v2274
    %v2291 = vunpack.c.l.b16 %v2275
    %v2292 = vunpack.c.l.b16 %v2276
    %v2293 = vunpack.c.l.b16 %v2277
    %v2294 = vpack.c.b16 %v2287, %v2286
    %v2295 = vpack.c.b16 %v2289, %v2288
    %v2296 = vpack.c.b16 %v2291, %v2290
    %v2297 = vpack.c.b16 %v2293, %v2292
    %v2302 = vsel %vm235, %v2268, 0
    %v2304 = vsel %vm235, %v2269, 0
    %2306 = vmatpush.bf16.msra.mxu0 0
    %2307 = vmatpush.bf16.msra.mxu0 0
    %2308 = vmatpush.bf16.msra.mxu0 0
    %2309 = vmatpush.bf16.msra.mxu0 0
    %2310 = vmatpush.bf16.msra.mxu0 %v2297
    %2311 = vmatpush.bf16.msra.mxu0 %v2296
    %2312 = vmatpush.bf16.msra.mxu0 %v2295
    %2313 = vmatpush.bf16.msra.mxu0 %v2294
    %2314 = vmatmul.bf16.gmra.mxu0 %v2302
    %v2315 = vpop.f32.mrf.mxu0
    %v2316 = vadd.f32 0.0, %v2315
    %v2317 = vpop.f32.mrf.mxu0
    %v2318 = vadd.f32 0.0, %v2317
    %2319 = vmatmul.bf16.gmra.mxu0 %v2304
    %v2320 = vpop.f32.mrf.mxu0
    %v2321 = vadd.f32 0.0, %v2320
    %v2322 = vpop.f32.mrf.mxu0
    %v2323 = vadd.f32 0.0, %v2322
    %2324 = vdwg.mxu0
    %v2325 = vld [vmem:[%s10] sm:$0x1]
    %v2326 = vld [vmem:[%s11] sm:$0x1]
    %v2327 = vadd.f32 %v2316, %v2318
    %v2328 = vadd.f32 %v2327, %v2321
    %v2329 = vadd.f32 %v2328, %v2323
    %v2330 = vrot.slane %v2329, 4
    %v2331 = vadd.f32 %v2329, %v2330
    %v2332 = vrot.slane %v2331, 2
    %v2333 = vadd.f32 %v2331, %v2332
    %v2334 = vrot.slane %v2333, 1
    %v2335 = vadd.f32 %v2333, %v2334
    %v2336 = vmul.f32 %v2316, %v2316
    %v2337 = vmul.f32 %v2318, %v2318
    %v2338 = vmul.f32 %v2321, %v2321
    %v2339 = vmul.f32 %v2323, %v2323
    %v2340 = vadd.f32 %v2336, %v2337
    %v2341 = vadd.f32 %v2340, %v2338
    %v2342 = vadd.f32 %v2341, %v2339
    %v2343 = vrot.slane %v2342, 4
    %v2344 = vadd.f32 %v2342, %v2343
    %v2345 = vrot.slane %v2344, 2
    %v2346 = vadd.f32 %v2344, %v2345
    %v2347 = vrot.slane %v2346, 1
    %v2348 = vadd.f32 %v2346, %v2347
    %v2349 = vmul.f32 %v2335, 0.03125
    %v2350 = vmul.f32 %v2348, 0.03125
    %v2351 = vmul.f32 %v2349, %v2349
    %v2352 = vsub.f32 %v2350, %v2351
    %v2353 = vmax.f32 %v2352, 0.0
    %v2354 = vadd.f32 %v2353, 1e-05
    %v2355 = vrsqrt.pop %v2354
    %v2356 = vmul.f32 %v2355, %v2354
    %v2357 = vmul.f32 %v2356, %v2355
    %v2358 = vmul.f32 0.5, %v2357
    %v2359 = vsub.f32 1.5, %v2358
    %v2360 = vmul.f32 %v2355, %v2359
    %vm2361 = vweird.f32 %v2354
    %vm2362 = vweird.f32 %v2355
    %vm2363 = vmor %vm2361, %vm2362
    %v2364 = vsel %vm2363, %v2355, %v2360
    %v2365 = vmul.f32 %v2325, %v2364
    %v2366 = vmul.f32 %v2349, %v2365
    %v2367 = vsub.f32 %v2326, %v2366
    %v2369 = vperm.slane %v2365, 0
    %v2371 = vmul.f32 %v2316, %v2369
    %v2372 = vmul.f32 %v2318, %v2369
    %v2373 = vmul.f32 %v2321, %v2369
    %v2374 = vmul.f32 %v2323, %v2369
    %v2376 = vperm.slane %v2367, 0
    %v2378 = vadd.f32 %v2371, %v2376
    %v2379 = vadd.f32 %v2372, %v2376
    %v2380 = vadd.f32 %v2373, %v2376
    %v2381 = vadd.f32 %v2374, %v2376
    %v2382 = vadd.f32 %v2378, %v2379
    %v2383 = vrot.slane %v2382, 4
    %v2384 = vadd.f32 %v2382, %v2383
    %v2385 = vrot.slane %v2384, 2
    %v2386 = vadd.f32 %v2384, %v2385
    %v2387 = vrot.slane %v2386, 1
    %v2388 = vadd.f32 %v2386, %v2387
    %v2389 = vadd.f32 %v2380, %v2381
    %v2390 = vrot.slane %v2389, 4
    %v2391 = vadd.f32 %v2389, %v2390
    %v2392 = vrot.slane %v2391, 2
    %v2393 = vadd.f32 %v2391, %v2392
    %v2394 = vrot.slane %v2393, 1
    %v2395 = vadd.f32 %v2393, %v2394
    %v2396 = vrcp.pop 16.0
    %v2397 = vmul.f32 16.0, %v2396
    %v2398 = vsub.f32 1.0, %v2397
    %v2399 = vmul.f32 %v2396, %v2398
    %v2400 = vadd.f32 %v2396, %v2399
    %vm2401 = vweird.f32 %v2396
    %v2402 = vsel %vm2401, %v2396, %v2400
    %v2403 = vmul.f32 %v2388, %v2402
    %v2404 = vmul.f32 %v2395, %v2402
    %v2405 = vpack.c.bf16 %v2403, %v2403
    %v2406 = vpack.c.bf16 %v2404, %v2404
    %v2407 = vld [vmem:[#allocation5] sm:$0xf]
    %v2408 = vld [vmem:[#allocation5 + $0x4] sm:$0xf]
    %v2409 = vld [vmem:[#allocation5 + $0x8] sm:$0xf]
    %v2410 = vld [vmem:[#allocation5 + $0xc] sm:$0xf]
    %v2411 = vld [vmem:[#allocation5 + $0x10] sm:$0xf]
    %v2412 = vld [vmem:[#allocation5 + $0x14] sm:$0xf]
    %v2413 = vld [vmem:[#allocation5 + $0x18] sm:$0xf]
    %v2414 = vld [vmem:[#allocation5 + $0x1c] sm:$0xf]
    %v2415 = vld [vmem:[#allocation5 + $0x20] sm:$0xf]
    %v2416 = vld [vmem:[#allocation5 + $0x24] sm:$0xf]
    %v2417 = vld [vmem:[#allocation5 + $0x28] sm:$0xf]
    %v2418 = vld [vmem:[#allocation5 + $0x2c] sm:$0xf]
    %v2419 = vld [vmem:[#allocation5 + $0x30] sm:$0xf]
    %v2420 = vld [vmem:[#allocation5 + $0x34] sm:$0xf]
    %v2421 = vld [vmem:[#allocation5 + $0x38] sm:$0xf]
    %v2422 = vld [vmem:[#allocation5 + $0x3c] sm:$0xf]
    %v2425 = vunpack.c.l.b16 %v2405
    %v2426 = vunpack.c.l.b16 %v2406
    %vm2427 = vcmask 1041409
    %v2428 = vsel %vm2427, %v2426, %v2425
    %v2429 = vpack.c.b16 %v2428, %v2428
    %v2447 = vunpack.c.l.b16 %v2407
    %v2448 = vunpack.c.l.b16 %v2408
    %v2449 = vunpack.c.l.b16 %v2409
    %v2450 = vunpack.c.l.b16 %v2410
    %v2451 = vunpack.c.l.b16 %v2411
    %v2452 = vunpack.c.l.b16 %v2412
    %v2453 = vunpack.c.l.b16 %v2413
    %v2454 = vunpack.c.l.b16 %v2414
    %v2455 = vunpack.c.l.b16 %v2415
    %v2456 = vunpack.c.l.b16 %v2416
    %v2457 = vunpack.c.l.b16 %v2417
    %v2458 = vunpack.c.l.b16 %v2418
    %v2459 = vunpack.c.l.b16 %v2419
    %v2460 = vunpack.c.l.b16 %v2420
    %v2461 = vunpack.c.l.b16 %v2421
    %v2462 = vunpack.c.l.b16 %v2422
    %v2463 = vpack.c.b16 %v2448, %v2447
    %v2464 = vpack.c.b16 %v2450, %v2449
    %v2465 = vpack.c.b16 %v2452, %v2451
    %v2466 = vpack.c.b16 %v2454, %v2453
    %v2467 = vpack.c.b16 %v2456, %v2455
    %v2468 = vpack.c.b16 %v2458, %v2457
    %v2469 = vpack.c.b16 %v2460, %v2459
    %v2470 = vpack.c.b16 %v2462, %v2461
    %2479 = vmatpush.bf16.msra.mxu0 %v2470
    %2480 = vmatpush.bf16.msra.mxu0 %v2469
    %2481 = vmatpush.bf16.msra.mxu0 %v2468
    %2482 = vmatpush.bf16.msra.mxu0 %v2467
    %2483 = vmatpush.bf16.msra.mxu0 %v2466
    %2484 = vmatpush.bf16.msra.mxu0 %v2465
    %2485 = vmatpush.bf16.msra.mxu0 %v2464
    %2486 = vmatpush.bf16.msra.mxu0 %v2463
    %2487 = vmatmul.bf16.gmra.mxu0 %v2429
    %v2488 = vpop.f32.mrf.mxu0
    %v2489 = vadd.f32 0.0, %v2488
    %v2490 = vpop.f32.mrf.mxu0
    %2491 = vdwg.mxu0
    %v2492 = vmax.f32 %v2489, 0.0
    %v2493 = vpack.c.bf16 %v2492, %v2492
    %v2494 = vld [vmem:[#allocation7] sm:$0xf]
    %v2495 = vld [vmem:[#allocation7 + $0x4] sm:$0xf]
    %v2496 = vld [vmem:[#allocation7 + $0x8] sm:$0xf]
    %v2497 = vld [vmem:[#allocation7 + $0xc] sm:$0xf]
    %v2498 = vld [vmem:[#allocation7 + $0x10] sm:$0xf]
    %v2499 = vld [vmem:[#allocation7 + $0x14] sm:$0xf]
    %v2500 = vld [vmem:[#allocation7 + $0x18] sm:$0xf]
    %v2501 = vld [vmem:[#allocation7 + $0x1c] sm:$0xf]
    %v2502 = vld [vmem:[#allocation7 + $0x20] sm:$0xf]
    %v2503 = vld [vmem:[#allocation7 + $0x24] sm:$0xf]
    %v2504 = vld [vmem:[#allocation7 + $0x28] sm:$0xf]
    %v2505 = vld [vmem:[#allocation7 + $0x2c] sm:$0xf]
    %v2506 = vld [vmem:[#allocation7 + $0x30] sm:$0xf]
    %v2507 = vld [vmem:[#allocation7 + $0x34] sm:$0xf]
    %v2508 = vld [vmem:[#allocation7 + $0x38] sm:$0xf]
    %v2509 = vld [vmem:[#allocation7 + $0x3c] sm:$0xf]
    %v2526 = vunpack.c.l.b16 %v2494
    %v2527 = vunpack.c.l.b16 %v2495
    %v2528 = vunpack.c.l.b16 %v2496
    %v2529 = vunpack.c.l.b16 %v2497
    %v2530 = vunpack.c.l.b16 %v2498
    %v2531 = vunpack.c.l.b16 %v2499
    %v2532 = vunpack.c.l.b16 %v2500
    %v2533 = vunpack.c.l.b16 %v2501
    %v2534 = vunpack.c.l.b16 %v2502
    %v2535 = vunpack.c.l.b16 %v2503
    %v2536 = vunpack.c.l.b16 %v2504
    %v2537 = vunpack.c.l.b16 %v2505
    %v2538 = vunpack.c.l.b16 %v2506
    %v2539 = vunpack.c.l.b16 %v2507
    %v2540 = vunpack.c.l.b16 %v2508
    %v2541 = vunpack.c.l.b16 %v2509
    %v2542 = vpack.c.b16 %v2527, %v2526
    %v2543 = vpack.c.b16 %v2529, %v2528
    %v2544 = vpack.c.b16 %v2531, %v2530
    %v2545 = vpack.c.b16 %v2533, %v2532
    %v2546 = vpack.c.b16 %v2535, %v2534
    %v2547 = vpack.c.b16 %v2537, %v2536
    %v2548 = vpack.c.b16 %v2539, %v2538
    %v2549 = vpack.c.b16 %v2541, %v2540
    %2558 = vmatpush.bf16.msra.mxu0 %v2549
    %2559 = vmatpush.bf16.msra.mxu0 %v2548
    %2560 = vmatpush.bf16.msra.mxu0 %v2547
    %2561 = vmatpush.bf16.msra.mxu0 %v2546
    %2562 = vmatpush.bf16.msra.mxu0 %v2545
    %2563 = vmatpush.bf16.msra.mxu0 %v2544
    %2564 = vmatpush.bf16.msra.mxu0 %v2543
    %2565 = vmatpush.bf16.msra.mxu0 %v2542
    %2566 = vmatmul.bf16.gmra.mxu0 %v2493
    %v2567 = vpop.f32.mrf.mxu0
    %v2568 = vadd.f32 0.0, %v2567
    %v2569 = vpop.f32.mrf.mxu0
    %2570 = vdwg.mxu0
    %v2571 = vxor.u32 %v2568, 2147483648
    %v2572 = vmul.f32 %v2571, 1.442695
    %v2573 = vpow.pop %v2572
    %v2574 = vadd.f32 %v2573, 1.0
    %v2575 = vrcp.pop %v2574
    %v2576 = vmul.f32 %v2574, %v2575
    %v2577 = vsub.f32 1.0, %v2576
    %v2578 = vmul.f32 %v2575, %v2577
    %v2579 = vadd.f32 %v2575, %v2578
    %vm2580 = vweird.f32 %v2574
    %vm2581 = vweird.f32 %v2575
    %vm2582 = vmor %vm2580, %vm2581
    %v2583 = vsel %vm2582, %v2575, %v2579
    %v2584 = vand.u32 2147483647, %v2574
    %vm2585 = vcmp.eq.f32.partialorder %v2584, 8.507059e+37
    %v2586 = vand.u32 %v2574, 2147483648
    %v2587 = vor.u32 1.1754944e-38, %v2586
    %v2588 = vsel %vm2585, %v2587, %v2583
    %v2589 = vmul.f32 1.0, %v2588
    %v2591 = vrot.slane %v2589, 1
    %v2592 = vperm.slane %v2589, 0
    %v2593 = vperm.slane %v2591, 0
    %v2596 = vmul.f32 %v2378, %v2592
    %v2597 = vmul.f32 %v2379, %v2592
    %v2598 = vmul.f32 %v2380, %v2593
    %v2599 = vmul.f32 %v2381, %v2593
    %2608 = vrot.lane.b32.xlu0 %v416, 64
    %v2609 = vpop.permute.xlu0 %2608
    %2610 = vrot.lane.b32.xlu0 %v417, 64
    %v2611 = vpop.permute.xlu0 %2610
    %2612 = vrot.lane.b32.xlu0 %v418, 64
    %v2613 = vpop.permute.xlu0 %2612
    %2614 = vrot.lane.b32.xlu0 %v419, 64
    %v2615 = vpop.permute.xlu0 %2614
    %2616 = vrot.lane.b32.xlu0 %v420, 64
    %v2617 = vpop.permute.xlu0 %2616
    %2618 = vrot.lane.b32.xlu0 %v421, 64
    %v2619 = vpop.permute.xlu0 %2618
    %2620 = vrot.lane.b32.xlu0 %v422, 64
    %v2621 = vpop.permute.xlu0 %2620
    %2622 = vrot.lane.b32.xlu0 %v423, 64
    %v2623 = vpop.permute.xlu0 %2622
    %v2624 = vsel %vm235, %v2609, %v2611
    %v2625 = vsel %vm235, %v2613, %v2615
    %v2626 = vsel %vm235, %v2617, %v2619
    %v2627 = vsel %vm235, %v2621, %v2623
    %v2632 = vadd.f32 %v2596, %v2624
    %v2633 = vadd.f32 %v2597, %v2625
    %v2634 = vadd.f32 %v2598, %v2626
    %v2635 = vadd.f32 %v2599, %v2627
    %v2636 = vmax.f32 %v2632, 0.0
    %v2637 = vmax.f32 %v2633, 0.0
    %v2638 = vmax.f32 %v2634, 0.0
    %v2639 = vmax.f32 %v2635, 0.0
    %2640 = vst [vmem:[#allocation8] sm:$0xff] %v2636
    %2641 = vst [vmem:[#allocation8 + $0x8] sm:$0xff] %v2637
    %2642 = vst [vmem:[#allocation8 + $0x10] sm:$0xff] %v2638
    %2643 = vst [vmem:[#allocation8 + $0x18] sm:$0xff] %v2639
    // Predicated region
    $region70: #{tpu_custom_call.1} parent=1 // pred_check
      _
    $region71: #{tpu_custom_call.1} parent=1 // pred_check_branch
      %2645 = sbr.rel (0) target = $region73
    $region72: #{tpu_custom_call.1} parent=1 // pred_region
      %2647 = vsyncadd [#allocation4], 0
      %s2648 = sshll.u32 [#allocation8], 4
      %s2649 = int_to_ptr.vmem [resolvable:$true] %s2648
      %s2650 = sshll.u32 %s14, 4
      %s2651 = int_to_ptr.hbm [resolvable:$true] %s2650
      %2656 = dma.vmem_to_hbm [thread:$0]  %s2649, 512, %s2651, [#allocation4], 128, 128, 8
    $region73: #{tpu_custom_call.1} parent=1 // pred_fallthru
      _
    // Predicated region
    $region74: #{tpu_custom_call.1} parent=1 // pred_check
      _
    $region75: #{tpu_custom_call.1} parent=1 // pred_check_branch
      %2658 = sbr.rel (0) target = $region77
    $region76: #{tpu_custom_call.1} parent=1 // pred_region
      %2660 = dma.done [#allocation4], 512
    $region77: #{tpu_custom_call.1} parent=1 // pred_fallthru
      _
    %2661 = vsyncpa [#allocation3], 1
    %2662 = vsyncpa [#allocation6], 1
    %2663 = vsyncpa [#allocation4], 1

</llo_original>
